<compile_context>
chip_gen: v7x
topology: tpu7x:2x2x1
jax: 0.10.0
libtpu: 0.0.40
codegen_flags: <defaults>
</compile_context>

<pallas_src>
import jax
import jax.numpy as jnp
from jax import lax
from jax.experimental import pallas as pl
from jax.experimental.pallas import tpu as pltpu


# --------------------------------------------------------------------------- #
# Kernel
# --------------------------------------------------------------------------- #
def _embedding_layer_kernel(ids_ref, table_ref, w1_ref, b1_ref, w2_ref, wd_ref,
                            bc_ref, o_ref):
    """One grid step: gather + folded 2-stage MLP for tmp*pack node ids.

    ids_ref  : (tmp, pack)         int32  node ids, `pack` per packed row
    table_ref: (nn_pad, din)       bf16   fused raw [text|domain] table (VMEM resident)
    w1_ref   : (din, 2H)           bf16   min-max norm + Linear1 + BN1 folded
    b1_ref   : (1, 2H)             f32
    w2_ref   : (pack*2H, pack*H)   bf16   w*(Linear2+BN2) folded, kron column-placed
    wd_ref   : (pack*din, pack*H)  bf16   (1-w)*Linear_pe folded, kron column-placed
    bc_ref   : (1, pack*H)         f32    combined bias, tiled per segment
    o_ref    : (tmp, pack*H)       f32    lane-dense packed output
    """
    tmp, pack = ids_ref.shape
    nn_pad = table_ref.shape[0]
    din, h2 = w1_ref.shape

    ids = ids_ref[...]
    table = table_ref[...]
    w1 = w1_ref[...]
    b1 = b1_ref[...]
    lane = lax.broadcasted_iota(jnp.int32, (tmp, nn_pad), 1)

    acc = jnp.zeros(o_ref.shape, jnp.float32)
    for p in range(pack):                                    # static, pack <= 4
        # in-kernel gather: one-hot (VPU) + MXU matmul against the VMEM table.
        oh = (lane == ids[:, p:p + 1]).astype(jnp.bfloat16)  # (tmp, nn_pad)
        x_p = jnp.dot(oh, table,
                      preferred_element_type=jnp.float32).astype(jnp.bfloat16)
        # stage 1: folded (min-max norm + Linear1 + BN1) + ReLU (Dropout = id, eval)
        h = jnp.dot(x_p, w1, preferred_element_type=jnp.float32) + b1
        h = jnp.maximum(h, 0.0).astype(jnp.bfloat16)         # (tmp, 2H)
        # stage 2: w*(Linear2+BN2) and (1-w)*Linear_pe, placed at column block p
        acc = acc + jnp.dot(h, w2_ref[p * h2:(p + 1) * h2, :],
                            preferred_element_type=jnp.float32)
        acc = acc + jnp.dot(x_p, wd_ref[p * din:(p + 1) * din, :],
                            preferred_element_type=jnp.float32)
    o_ref[...] = (acc + bc_ref[...]).astype(o_ref.dtype)


# --------------------------------------------------------------------------- #
# One-time parameter preparation (folding + lane packing + bf16 cast)
# --------------------------------------------------------------------------- #
def _bn_fold(gamma, beta, mean, var, eps=1e-5):
    scale = gamma / jnp.sqrt(var + eps)
    shift = beta - mean * scale
    return scale, shift


def prepare_embedding_layer(params, *, w=0.5):
    """Fold min-max normalization, eval-mode BatchNorm and the combine weight w
    into the linear weights, fuse the two gather tables, kron-pack the tiny
    output dim and cast matmul operands to bf16 (biases stay f32)."""
    text_tab = params["text_emb"].astype(jnp.float32)
    dom_tab = params["domain_emb"].astype(jnp.float32)
    num_nodes, d_text = text_tab.shape
    d_dom = dom_tab.shape[1]

    def minmax_affine(tab):
        lo, hi = tab.min(), tab.max()
        # NOTE: intentional divergence from the reference, which would produce
        # inf/nan on a constant table; guarded here with denom -> 1.
        denom = jnp.where(hi - lo == 0, 1.0, hi - lo)
        a = 1.0 / denom
        return a, -lo * a                                  # norm(x) = a*x + c

    a_t, c_t = minmax_affine(text_tab)
    a_d, c_d = minmax_affine(dom_tab)

    # encoder stage 1: BN1(Linear1(norm_text(x)))
    s1, t1 = _bn_fold(params["bn1_gamma"], params["bn1_beta"],
                      params["bn1_mean"], params["bn1_var"])
    w1 = params["enc_w1"]                                  # (d_text, 2H)
    w1f = (a_t * w1) * s1[None, :]
    b1f = (params["enc_b1"] + c_t * w1.sum(axis=0)) * s1 + t1

    # encoder stage 2: w * BN2(Linear2(.))
    s2, t2 = _bn_fold(params["bn2_gamma"], params["bn2_beta"],
                      params["bn2_mean"], params["bn2_var"])
    w2f = w * params["enc_w2"] * s2[None, :]               # (2H, H)
    b2f = w * (params["enc_b2"] * s2 + t2)

    # domain path: (1 - w) * Linear_pe(norm_dom(x))
    wd = params["pe_w"]                                     # (d_dom, H)
    wdf = (1.0 - w) * (a_d * wd)
    bdf = (1.0 - w) * (params["pe_b"] + c_d * wd.sum(axis=0))

    h2 = w1f.shape[1]
    hidden = w2f.shape[1]
    din = d_text + d_dom

    # fused raw [text | domain] gather table, row-padded to a multiple of 128 so
    # the in-kernel one-hot has a clean lane extent (padded rows are zero and
    # unreachable since ids < num_nodes).
    nn_pad = ((num_nodes + 127) // 128) * 128
    table = jnp.concatenate([text_tab, dom_tab], axis=1)     # (num_nodes, din)
    table = jnp.pad(table, ((0, nn_pad - num_nodes), (0, 0)))

    # slab weights so the kernel consumes the fused [text|domain] row directly
    w1_slab = jnp.concatenate(
        [w1f, jnp.zeros((d_dom, h2), jnp.float32)], axis=0)         # (din, 2H)
    wd_slab = jnp.concatenate(
        [jnp.zeros((d_text, hidden), jnp.float32), wdf], axis=0)    # (din, H)

    # lane packing: process `pack` node rows per sublane row; the kron places
    # each segment's stage-2 result into its own 128-lane column block.
    pack = 128 // hidden if (hidden <= 128 and 128 % hidden == 0) else 1
    eye = jnp.eye(pack, dtype=jnp.float32)

    cdt = jnp.bfloat16
    return dict(
        table=table.astype(cdt),                          # (nn_pad, din)
        w1=w1_slab.astype(cdt),                            # (din, 2H)
        b1=b1f[None, :].astype(jnp.float32),               # (1, 2H)
        w2=jnp.kron(eye, w2f).astype(cdt),                 # (pack*2H, pack*H)
        wd=jnp.kron(eye, wd_slab).astype(cdt),             # (pack*din, pack*H)
        bc=jnp.tile(b2f + bdf, pack)[None, :].astype(jnp.float32),  # (1, pack*H)
        pack=pack, hidden=hidden, din=din, h2=h2,
        nn_pad=nn_pad, num_nodes=num_nodes,
    )


# --------------------------------------------------------------------------- #
# Forward wrapper
# --------------------------------------------------------------------------- #
def embedding_layer_forward(node_ids, prepared, *, tm_max=2048):
    """node_ids: int32 (N,) or (N,1); returns combined embedding (N, hidden)."""
    ids = jnp.reshape(node_ids, (-1,)).astype(jnp.int32)   # mimics .squeeze()
    n = ids.shape[0]
    pack = prepared["pack"]
    hidden = prepared["hidden"]

    # Row-tile selection: big tiles amortize the ~0.35 us/step pipeline overhead,
    # but keep >= ~8 grid steps when N allows so both v7x TensorCores get several
    # iterations each (v5e/v6e: >= 2-3 steps for double buffering).
    unit = 8 * pack                                         # keeps tmp a multiple of 8
    tm = min(tm_max, max(unit, ((n // 8) // unit) * unit))

    n_pad = pl.cdiv(n, tm) * tm
    if n_pad != n:                                          # ragged N: pad ids, slice output
        ids = jnp.concatenate([ids, jnp.zeros((n_pad - n,), jnp.int32)])
    ids2d = ids.reshape(n_pad // pack, pack)

    tmp = tm // pack                                        # packed rows per grid step
    grid = (n_pad // tm,)

    table, w1, b1, w2, wd, bc = (prepared[k] for k in
                                 ("table", "w1", "b1", "w2", "wd", "bc"))
    const = lambda a: pl.BlockSpec(a.shape, lambda i: (0, 0))   # grid-invariant

    out = pl.pallas_call(
        _embedding_layer_kernel,
        out_shape=jax.ShapeDtypeStruct((n_pad // pack, pack * hidden), jnp.float32),
        grid_spec=pltpu.PrefetchScalarGridSpec(
            num_scalar_prefetch=0,
            grid=grid,
            in_specs=[
                pl.BlockSpec((tmp, pack), lambda i: (i, 0)),     # node ids (packed)
                const(table),                                    # VMEM-resident table
                const(w1), const(b1),                            # folded stage 1
                const(w2), const(wd), const(bc),                 # folded stage 2
            ],
            out_specs=pl.BlockSpec((tmp, pack * hidden), lambda i: (i, 0)),
        ),
        compiler_params=pltpu.CompilerParams(
            dimension_semantics=("parallel",)),
    )(ids2d, table, w1, b1, w2, wd, bc)

    return out.reshape(n_pad, hidden)[:n]


# --------------------------------------------------------------------------- #
# Pure-JAX reference (mirrors the PyTorch module, eval mode) and test harness
# --------------------------------------------------------------------------- #
def _reference_forward(node_ids, params, *, w=0.5):
    ids = jnp.reshape(node_ids, (-1,))
    text_tab = params["text_emb"]
    dom_tab = params["domain_emb"]
    norm_text = (text_tab - text_tab.min()) / (text_tab.max() - text_tab.min())
    norm_dom = (dom_tab - dom_tab.min()) / (dom_tab.max() - dom_tab.min())
    xt = jnp.take(norm_text, ids, axis=0)
    xd = jnp.take(norm_dom, ids, axis=0)

    def bn(x, g, b, m, v, eps=1e-5):
        return (x - m) / jnp.sqrt(v + eps) * g + b

    h1 = xt @ params["enc_w1"] + params["enc_b1"]
    h1 = jnp.maximum(bn(h1, params["bn1_gamma"], params["bn1_beta"],
                        params["bn1_mean"], params["bn1_var"]), 0.0)
    enc = bn(h1 @ params["enc_w2"] + params["enc_b2"],
             params["bn2_gamma"], params["bn2_beta"],
             params["bn2_mean"], params["bn2_var"])
    dom = xd @ params["pe_w"] + params["pe_b"]
    return (1.0 - w) * dom + w * enc


def _init_params(key, num_nodes, hidden_dim, text_dim, dom_dim):
    ks = jax.random.split(key, 16)
    h2 = 2 * hidden_dim
    u = lambda k, shape, s=0.1: jax.random.uniform(k, shape, jnp.float32, -s, s)
    return {
        # pretrained tables (synthetic, deterministic)
        "text_emb": jax.random.normal(ks[0], (num_nodes, text_dim), jnp.float32),
        "domain_emb": jax.random.normal(ks[1], (num_nodes, dom_dim), jnp.float32),
        # autoencoder encoder: Linear(text_dim, 2H), BN(2H), Linear(2H, H), BN(H)
        "enc_w1": u(ks[2], (text_dim, h2)),
        "enc_b1": u(ks[3], (h2,)),
        "bn1_gamma": 1.0 + u(ks[4], (h2,)),
        "bn1_beta": u(ks[5], (h2,)),
        "bn1_mean": u(ks[6], (h2,)),
        "bn1_var": 1.0 + jax.random.uniform(ks[7], (h2,), jnp.float32, 0.0, 0.2),
        "enc_w2": u(ks[8], (h2, hidden_dim)),
        "enc_b2": u(ks[9], (hidden_dim,)),
        "bn2_gamma": 1.0 + u(ks[10], (hidden_dim,)),
        "bn2_beta": u(ks[11], (hidden_dim,)),
        "bn2_mean": u(ks[12], (hidden_dim,)),
        "bn2_var": 1.0 + jax.random.uniform(ks[13], (hidden_dim,), jnp.float32, 0.0, 0.2),
        # poincare_to_euclidean: Linear(dom_dim, H)
        "pe_w": u(ks[14], (dom_dim, hidden_dim)),
        "pe_b": u(ks[15], (hidden_dim,)),
    }


if __name__ == "__main__":
    num_nodes, hidden_dim, text_dim, dom_dim = 300, 32, 48, 16
    n_ids, w = 1000, 0.5

    key = jax.random.PRNGKey(0)
    kp, ki = jax.random.split(key)
    params = _init_params(kp, num_nodes, hidden_dim, text_dim, dom_dim)
    # mimic the .squeeze() in the PyTorch forward: ids arrive as (N, 1)
    node_ids = jax.random.randint(ki, (n_ids, 1), 0, num_nodes, jnp.int32)

    prepared = prepare_embedding_layer(params, w=w)          # one-time folding
    out = embedding_layer_forward(node_ids, prepared)
    out = jax.block_until_ready(out)

    ref = _reference_forward(node_ids, params, w=w)
    assert out.shape == (n_ids, hidden_dim)
    max_err = jnp.max(jnp.abs(out - ref))
    # bf16 matmul operands (f32 accumulation): tolerance relaxed vs the pure-f32 path.
    assert jnp.allclose(out, ref, rtol=2e-2, atol=2e-2), (
        f"mismatch vs JAX reference, max abs err={max_err}")
    print("KERNEL_OK")
</pallas_src>

<mosaic_0001>
module attributes {stable_mosaic.version = 11 : i64} {
  func.func @_embedding_layer_kernel(%arg0: i32, %arg1: memref<24x4xi32, #tpu.memory_space<vmem>>, %arg2: memref<384x64xbf16, #tpu.memory_space<vmem>>, %arg3: memref<64x64xbf16, #tpu.memory_space<vmem>>, %arg4: memref<1x64xf32, #tpu.memory_space<vmem>>, %arg5: memref<256x128xbf16, #tpu.memory_space<vmem>>, %arg6: memref<256x128xbf16, #tpu.memory_space<vmem>>, %arg7: memref<1x128xf32, #tpu.memory_space<vmem>>, %arg8: memref<24x128xf32, #tpu.memory_space<vmem>>) attributes {dimension_semantics = [#tpu.dimension_semantics<parallel>], iteration_bounds = array<i64: 11>, scalar_prefetch = 0 : i64, scratch_operands = 0 : i64, tpu.core_type = #tpu.core_type<tc>, window_params = [{transform_indices = @transform_0, window_bounds = array<i64: 24, 4>}, {pipeline_mode = #tpu.pipeline_mode<synchronous>, transform_indices = @transform_1, window_bounds = array<i64: 384, 64>}, {pipeline_mode = #tpu.pipeline_mode<synchronous>, transform_indices = @transform_2, window_bounds = array<i64: 64, 64>}, {pipeline_mode = #tpu.pipeline_mode<synchronous>, transform_indices = @transform_3, window_bounds = array<i64: 1, 64>}, {pipeline_mode = #tpu.pipeline_mode<synchronous>, transform_indices = @transform_4, window_bounds = array<i64: 256, 128>}, {pipeline_mode = #tpu.pipeline_mode<synchronous>, transform_indices = @transform_5, window_bounds = array<i64: 256, 128>}, {pipeline_mode = #tpu.pipeline_mode<synchronous>, transform_indices = @transform_6, window_bounds = array<i64: 1, 128>}, {transform_indices = @transform_7, window_bounds = array<i64: 24, 128>}]} {
    %c0 = arith.constant 0 : index
    %c0_0 = arith.constant 0 : index
    %0 = vector.load %arg1[%c0, %c0_0] : memref<24x4xi32, #tpu.memory_space<vmem>>, vector<24x4xi32>
    %c0_1 = arith.constant 0 : index
    %c0_2 = arith.constant 0 : index
    %1 = vector.load %arg2[%c0_1, %c0_2] : memref<384x64xbf16, #tpu.memory_space<vmem>>, vector<384x64xbf16>
    %c0_3 = arith.constant 0 : index
    %c0_4 = arith.constant 0 : index
    %2 = vector.load %arg3[%c0_3, %c0_4] : memref<64x64xbf16, #tpu.memory_space<vmem>>, vector<64x64xbf16>
    %c0_5 = arith.constant 0 : index
    %c0_6 = arith.constant 0 : index
    %3 = vector.load %arg4[%c0_5, %c0_6] : memref<1x64xf32, #tpu.memory_space<vmem>>, vector<1x64xf32>
    %4 = tpu.iota {dimensions = array<i32: 1>} : vector<24x384xi32>
    %cst = arith.constant 0.000000e+00 : f32
    %5 = vector.broadcast %cst : f32 to vector<24x128xf32>
    %6 = vector.extract_strided_slice %0 {offsets = [0, 0], sizes = [24, 1], strides = [1, 1]} : vector<24x4xi32> to vector<24x1xi32>
    %7 = vector.broadcast %6 : vector<24x1xi32> to vector<24x384xi32>
    %8 = arith.cmpi eq, %4, %7 : vector<24x384xi32>
    %9 = arith.extui %8 : vector<24x384xi1> to vector<24x384xi32>
    %10 = arith.sitofp %9 : vector<24x384xi32> to vector<24x384xf32>
    %11 = arith.truncf %10 : vector<24x384xf32> to vector<24x384xbf16>
    %cst_7 = arith.constant dense<0.000000e+00> : vector<24x64xf32>
    %12 = tpu.matmul %11, %1, %cst_7 {dimension_numbers = #tpu.dot_dimension_numbers<[1], [0], [0], [1], [0, 0, 1, 1], [], []>} : vector<24x384xbf16>, vector<384x64xbf16>, vector<24x64xf32> -> vector<24x64xf32>
    %13 = arith.truncf %12 : vector<24x64xf32> to vector<24x64xbf16>
    %cst_8 = arith.constant dense<0.000000e+00> : vector<24x64xf32>
    %14 = tpu.matmul %13, %2, %cst_8 {dimension_numbers = #tpu.dot_dimension_numbers<[1], [0], [0], [1], [0, 0, 1, 1], [], []>} : vector<24x64xbf16>, vector<64x64xbf16>, vector<24x64xf32> -> vector<24x64xf32>
    %15 = vector.broadcast %3 : vector<1x64xf32> to vector<24x64xf32>
    %16 = arith.addf %14, %15 : vector<24x64xf32>
    %cst_9 = arith.constant 0.000000e+00 : f32
    %17 = vector.broadcast %cst_9 : f32 to vector<24x64xf32>
    %18 = arith.maximumf %16, %17 : vector<24x64xf32>
    %19 = arith.truncf %18 : vector<24x64xf32> to vector<24x64xbf16>
    %c0_10 = arith.constant 0 : index
    %c0_11 = arith.constant 0 : index
    %20 = vector.load %arg5[%c0_10, %c0_11] : memref<256x128xbf16, #tpu.memory_space<vmem>>, vector<64x128xbf16>
    %cst_12 = arith.constant dense<0.000000e+00> : vector<24x128xf32>
    %21 = tpu.matmul %19, %20, %cst_12 {dimension_numbers = #tpu.dot_dimension_numbers<[1], [0], [0], [1], [0, 0, 1, 1], [], []>} : vector<24x64xbf16>, vector<64x128xbf16>, vector<24x128xf32> -> vector<24x128xf32>
    %22 = arith.addf %5, %21 : vector<24x128xf32>
    %c0_13 = arith.constant 0 : index
    %c0_14 = arith.constant 0 : index
    %23 = vector.load %arg6[%c0_13, %c0_14] : memref<256x128xbf16, #tpu.memory_space<vmem>>, vector<64x128xbf16>
    %cst_15 = arith.constant dense<0.000000e+00> : vector<24x128xf32>
    %24 = tpu.matmul %13, %23, %cst_15 {dimension_numbers = #tpu.dot_dimension_numbers<[1], [0], [0], [1], [0, 0, 1, 1], [], []>} : vector<24x64xbf16>, vector<64x128xbf16>, vector<24x128xf32> -> vector<24x128xf32>
    %25 = arith.addf %22, %24 : vector<24x128xf32>
    %26 = vector.extract_strided_slice %0 {offsets = [0, 1], sizes = [24, 1], strides = [1, 1]} : vector<24x4xi32> to vector<24x1xi32>
    %27 = vector.broadcast %26 : vector<24x1xi32> to vector<24x384xi32>
    %28 = arith.cmpi eq, %4, %27 : vector<24x384xi32>
    %29 = arith.extui %28 : vector<24x384xi1> to vector<24x384xi32>
    %30 = arith.sitofp %29 : vector<24x384xi32> to vector<24x384xf32>
    %31 = arith.truncf %30 : vector<24x384xf32> to vector<24x384xbf16>
    %cst_16 = arith.constant dense<0.000000e+00> : vector<24x64xf32>
    %32 = tpu.matmul %31, %1, %cst_16 {dimension_numbers = #tpu.dot_dimension_numbers<[1], [0], [0], [1], [0, 0, 1, 1], [], []>} : vector<24x384xbf16>, vector<384x64xbf16>, vector<24x64xf32> -> vector<24x64xf32>
    %33 = arith.truncf %32 : vector<24x64xf32> to vector<24x64xbf16>
    %cst_17 = arith.constant dense<0.000000e+00> : vector<24x64xf32>
    %34 = tpu.matmul %33, %2, %cst_17 {dimension_numbers = #tpu.dot_dimension_numbers<[1], [0], [0], [1], [0, 0, 1, 1], [], []>} : vector<24x64xbf16>, vector<64x64xbf16>, vector<24x64xf32> -> vector<24x64xf32>
    %35 = vector.broadcast %3 : vector<1x64xf32> to vector<24x64xf32>
    %36 = arith.addf %34, %35 : vector<24x64xf32>
    %cst_18 = arith.constant 0.000000e+00 : f32
    %37 = vector.broadcast %cst_18 : f32 to vector<24x64xf32>
    %38 = arith.maximumf %36, %37 : vector<24x64xf32>
    %39 = arith.truncf %38 : vector<24x64xf32> to vector<24x64xbf16>
    %c64 = arith.constant 64 : index
    %c0_19 = arith.constant 0 : index
    %40 = vector.load %arg5[%c64, %c0_19] : memref<256x128xbf16, #tpu.memory_space<vmem>>, vector<64x128xbf16>
    %cst_20 = arith.constant dense<0.000000e+00> : vector<24x128xf32>
    %41 = tpu.matmul %39, %40, %cst_20 {dimension_numbers = #tpu.dot_dimension_numbers<[1], [0], [0], [1], [0, 0, 1, 1], [], []>} : vector<24x64xbf16>, vector<64x128xbf16>, vector<24x128xf32> -> vector<24x128xf32>
    %42 = arith.addf %25, %41 : vector<24x128xf32>
    %c64_21 = arith.constant 64 : index
    %c0_22 = arith.constant 0 : index
    %43 = vector.load %arg6[%c64_21, %c0_22] : memref<256x128xbf16, #tpu.memory_space<vmem>>, vector<64x128xbf16>
    %cst_23 = arith.constant dense<0.000000e+00> : vector<24x128xf32>
    %44 = tpu.matmul %33, %43, %cst_23 {dimension_numbers = #tpu.dot_dimension_numbers<[1], [0], [0], [1], [0, 0, 1, 1], [], []>} : vector<24x64xbf16>, vector<64x128xbf16>, vector<24x128xf32> -> vector<24x128xf32>
    %45 = arith.addf %42, %44 : vector<24x128xf32>
    %46 = vector.extract_strided_slice %0 {offsets = [0, 2], sizes = [24, 1], strides = [1, 1]} : vector<24x4xi32> to vector<24x1xi32>
    %47 = vector.broadcast %46 : vector<24x1xi32> to vector<24x384xi32>
    %48 = arith.cmpi eq, %4, %47 : vector<24x384xi32>
    %49 = arith.extui %48 : vector<24x384xi1> to vector<24x384xi32>
    %50 = arith.sitofp %49 : vector<24x384xi32> to vector<24x384xf32>
    %51 = arith.truncf %50 : vector<24x384xf32> to vector<24x384xbf16>
    %cst_24 = arith.constant dense<0.000000e+00> : vector<24x64xf32>
    %52 = tpu.matmul %51, %1, %cst_24 {dimension_numbers = #tpu.dot_dimension_numbers<[1], [0], [0], [1], [0, 0, 1, 1], [], []>} : vector<24x384xbf16>, vector<384x64xbf16>, vector<24x64xf32> -> vector<24x64xf32>
    %53 = arith.truncf %52 : vector<24x64xf32> to vector<24x64xbf16>
    %cst_25 = arith.constant dense<0.000000e+00> : vector<24x64xf32>
    %54 = tpu.matmul %53, %2, %cst_25 {dimension_numbers = #tpu.dot_dimension_numbers<[1], [0], [0], [1], [0, 0, 1, 1], [], []>} : vector<24x64xbf16>, vector<64x64xbf16>, vector<24x64xf32> -> vector<24x64xf32>
    %55 = vector.broadcast %3 : vector<1x64xf32> to vector<24x64xf32>
    %56 = arith.addf %54, %55 : vector<24x64xf32>
    %cst_26 = arith.constant 0.000000e+00 : f32
    %57 = vector.broadcast %cst_26 : f32 to vector<24x64xf32>
    %58 = arith.maximumf %56, %57 : vector<24x64xf32>
    %59 = arith.truncf %58 : vector<24x64xf32> to vector<24x64xbf16>
    %c128 = arith.constant 128 : index
    %c0_27 = arith.constant 0 : index
    %60 = vector.load %arg5[%c128, %c0_27] : memref<256x128xbf16, #tpu.memory_space<vmem>>, vector<64x128xbf16>
    %cst_28 = arith.constant dense<0.000000e+00> : vector<24x128xf32>
    %61 = tpu.matmul %59, %60, %cst_28 {dimension_numbers = #tpu.dot_dimension_numbers<[1], [0], [0], [1], [0, 0, 1, 1], [], []>} : vector<24x64xbf16>, vector<64x128xbf16>, vector<24x128xf32> -> vector<24x128xf32>
    %62 = arith.addf %45, %61 : vector<24x128xf32>
    %c128_29 = arith.constant 128 : index
    %c0_30 = arith.constant 0 : index
    %63 = vector.load %arg6[%c128_29, %c0_30] : memref<256x128xbf16, #tpu.memory_space<vmem>>, vector<64x128xbf16>
    %cst_31 = arith.constant dense<0.000000e+00> : vector<24x128xf32>
    %64 = tpu.matmul %53, %63, %cst_31 {dimension_numbers = #tpu.dot_dimension_numbers<[1], [0], [0], [1], [0, 0, 1, 1], [], []>} : vector<24x64xbf16>, vector<64x128xbf16>, vector<24x128xf32> -> vector<24x128xf32>
    %65 = arith.addf %62, %64 : vector<24x128xf32>
    %66 = vector.extract_strided_slice %0 {offsets = [0, 3], sizes = [24, 1], strides = [1, 1]} : vector<24x4xi32> to vector<24x1xi32>
    %67 = vector.broadcast %66 : vector<24x1xi32> to vector<24x384xi32>
    %68 = arith.cmpi eq, %4, %67 : vector<24x384xi32>
    %69 = arith.extui %68 : vector<24x384xi1> to vector<24x384xi32>
    %70 = arith.sitofp %69 : vector<24x384xi32> to vector<24x384xf32>
    %71 = arith.truncf %70 : vector<24x384xf32> to vector<24x384xbf16>
    %cst_32 = arith.constant dense<0.000000e+00> : vector<24x64xf32>
    %72 = tpu.matmul %71, %1, %cst_32 {dimension_numbers = #tpu.dot_dimension_numbers<[1], [0], [0], [1], [0, 0, 1, 1], [], []>} : vector<24x384xbf16>, vector<384x64xbf16>, vector<24x64xf32> -> vector<24x64xf32>
    %73 = arith.truncf %72 : vector<24x64xf32> to vector<24x64xbf16>
    %cst_33 = arith.constant dense<0.000000e+00> : vector<24x64xf32>
    %74 = tpu.matmul %73, %2, %cst_33 {dimension_numbers = #tpu.dot_dimension_numbers<[1], [0], [0], [1], [0, 0, 1, 1], [], []>} : vector<24x64xbf16>, vector<64x64xbf16>, vector<24x64xf32> -> vector<24x64xf32>
    %75 = vector.broadcast %3 : vector<1x64xf32> to vector<24x64xf32>
    %76 = arith.addf %74, %75 : vector<24x64xf32>
    %cst_34 = arith.constant 0.000000e+00 : f32
    %77 = vector.broadcast %cst_34 : f32 to vector<24x64xf32>
    %78 = arith.maximumf %76, %77 : vector<24x64xf32>
    %79 = arith.truncf %78 : vector<24x64xf32> to vector<24x64xbf16>
    %c192 = arith.constant 192 : index
    %c0_35 = arith.constant 0 : index
    %80 = vector.load %arg5[%c192, %c0_35] : memref<256x128xbf16, #tpu.memory_space<vmem>>, vector<64x128xbf16>
    %cst_36 = arith.constant dense<0.000000e+00> : vector<24x128xf32>
    %81 = tpu.matmul %79, %80, %cst_36 {dimension_numbers = #tpu.dot_dimension_numbers<[1], [0], [0], [1], [0, 0, 1, 1], [], []>} : vector<24x64xbf16>, vector<64x128xbf16>, vector<24x128xf32> -> vector<24x128xf32>
    %82 = arith.addf %65, %81 : vector<24x128xf32>
    %c192_37 = arith.constant 192 : index
    %c0_38 = arith.constant 0 : index
    %83 = vector.load %arg6[%c192_37, %c0_38] : memref<256x128xbf16, #tpu.memory_space<vmem>>, vector<64x128xbf16>
    %cst_39 = arith.constant dense<0.000000e+00> : vector<24x128xf32>
    %84 = tpu.matmul %73, %83, %cst_39 {dimension_numbers = #tpu.dot_dimension_numbers<[1], [0], [0], [1], [0, 0, 1, 1], [], []>} : vector<24x64xbf16>, vector<64x128xbf16>, vector<24x128xf32> -> vector<24x128xf32>
    %85 = arith.addf %82, %84 : vector<24x128xf32>
    %c0_40 = arith.constant 0 : index
    %c0_41 = arith.constant 0 : index
    %86 = vector.load %arg7[%c0_40, %c0_41] : memref<1x128xf32, #tpu.memory_space<vmem>>, vector<1x128xf32>
    %87 = vector.broadcast %86 : vector<1x128xf32> to vector<24x128xf32>
    %88 = arith.addf %85, %87 : vector<24x128xf32>
    %c0_42 = arith.constant 0 : index
    %c0_43 = arith.constant 0 : index
    %89 = vector.load %arg8[%c0_42, %c0_43] : memref<24x128xf32, #tpu.memory_space<vmem>>, vector<24x128xf32>
    tpu.vector_store %arg8[%c0_42, %c0_43], %88 {strides = array<i32>} : memref<24x128xf32, #tpu.memory_space<vmem>>, vector<24x128xf32>,
    return
  }
  func.func @transform_0(%arg0: i32) -> (i32, i32) {
    %c0_i32 = arith.constant 0 : i32
    %c0_i32_0 = arith.constant 0 : i32
    return %arg0, %c0_i32 : i32, i32
  }
  func.func @transform_1(%arg0: i32) -> (i32, i32) {
    %c0_i32 = arith.constant 0 : i32
    %c0_i32_0 = arith.constant 0 : i32
    %c0_i32_1 = arith.constant 0 : i32
    return %c0_i32, %c0_i32_0 : i32, i32
  }
  func.func @transform_2(%arg0: i32) -> (i32, i32) {
    %c0_i32 = arith.constant 0 : i32
    %c0_i32_0 = arith.constant 0 : i32
    %c0_i32_1 = arith.constant 0 : i32
    return %c0_i32, %c0_i32_0 : i32, i32
  }
  func.func @transform_3(%arg0: i32) -> (i32, i32) {
    %c0_i32 = arith.constant 0 : i32
    %c0_i32_0 = arith.constant 0 : i32
    %c0_i32_1 = arith.constant 0 : i32
    return %c0_i32, %c0_i32_0 : i32, i32
  }
  func.func @transform_4(%arg0: i32) -> (i32, i32) {
    %c0_i32 = arith.constant 0 : i32
    %c0_i32_0 = arith.constant 0 : i32
    %c0_i32_1 = arith.constant 0 : i32
    return %c0_i32, %c0_i32_0 : i32, i32
  }
  func.func @transform_5(%arg0: i32) -> (i32, i32) {
    %c0_i32 = arith.constant 0 : i32
    %c0_i32_0 = arith.constant 0 : i32
    %c0_i32_1 = arith.constant 0 : i32
    return %c0_i32, %c0_i32_0 : i32, i32
  }
  func.func @transform_6(%arg0: i32) -> (i32, i32) {
    %c0_i32 = arith.constant 0 : i32
    %c0_i32_0 = arith.constant 0 : i32
    %c0_i32_1 = arith.constant 0 : i32
    return %c0_i32, %c0_i32_0 : i32, i32
  }
  func.func @transform_7(%arg0: i32) -> (i32, i32) {
    %c0_i32 = arith.constant 0 : i32
    %c0_i32_0 = arith.constant 0 : i32
    return %arg0, %c0_i32 : i32, i32
  }
}

</mosaic_0001>

<llo_original>
// kernel: tpu_custom_call.1
$region0: #{tpu_custom_call.1}
  #allocation0 [shape = 'u32[]', space=smem, size = 0x4, offset = 0x4, fixed_abs, tag = 'smem constant byte address 0x4 - core index']
  #allocation1 [shape = 'u32[144,128]{1,0:T(1,128)}', space=vmem, size = 0x12000, scoped, tag = 'internal scratch']
  %s0 = inlined_call_operand.vmem [shape: s32[264,4], index: 0, kind: input, shape index: {}]
  %s1 = inlined_call_operand.vmem [shape: bf16[384,64], index: 1, kind: input, shape index: {}]
  %s2 = inlined_call_operand.vmem [shape: bf16[64,64], index: 2, kind: input, shape index: {}]
  %s3 = inlined_call_operand.vmem [shape: f32[1,64], index: 3, kind: input, shape index: {}]
  %s4 = inlined_call_operand.vmem [shape: bf16[256,128], index: 4, kind: input, shape index: {}]
  %s5 = inlined_call_operand.vmem [shape: bf16[256,128], index: 5, kind: input, shape index: {}]
  %s6 = inlined_call_operand.vmem [shape: f32[1,128], index: 6, kind: input, shape index: {}]
  %s7 = inlined_call_operand.hbm [shape: f32[264,128], index: 7, kind: output, shape index: {}]
  %s8 = sld [smem:[#allocation0]]
  $region61: #{tpu_custom_call.1} parent=0
    _
  %s10 = ssub.s32 1, %s8
  %s11 = scalar_select 0, %s10, %s8
  $region1: #{tpu_custom_call.1} parent=0
    #allocation2 [shape = 'u8[24576]{0}', space=vmem, size = 0x6000, scoped, tag = 'output window, operand 0']
    #allocation3 [shape = 's32[2]{0}', space=sflag, size = 0x8, scoped, tag = 'scoped memory for tpu_custom_call.1']
    %12 = vsyncpa [#allocation3], 0
    %s13 = scalar_lea.sflag [#allocation3], 1
    %14 = vsyncpa %s13, 0
    loop: start=0, step=1, limit=13
    $region2: #{tpu_custom_call.1} parent=1 // loop_pre_header
      _
    $region3: #{tpu_custom_call.1} parent=1 // loop_header
      %s16 = sphi 0, %s20
      %p17 = scmp.ge.s32.totalorder %s16, 13
      %s26 = sphi 0, %s28
      %s29 = sphi 0, %s26
      %s30 = sphi 0, %s29
      %s46 = sphi 0, %s30
      %s50 = sphi 0, %s50
      %s52 = sphi 0, %s50
      %s53 = sphi 0, %s52
      %s67 = sphi 0, %s53
      %s71 = sphi 0, %s71
      %s73 = sphi 0, %s71
      %s74 = sphi 0, %s73
      %s88 = sphi 0, %s74
      %s92 = sphi 0, %s92
      %s94 = sphi 0, %s92
      %s95 = sphi 0, %s94
      %s109 = sphi 0, %s95
      %s113 = sphi 0, %s113
      %s115 = sphi 0, %s113
      %s116 = sphi 0, %s115
      %s130 = sphi 0, %s116
      %s134 = sphi 0, %s134
      %s136 = sphi 0, %s134
      %s137 = sphi 0, %s136
      %s151 = sphi 0, %s137
      %s155 = sphi 0, %s155
      %s157 = sphi 0, %s155
      %s158 = sphi 0, %s157
      %s172 = sphi 0, %s158
      %s178 = sphi 0, %s180
      %s181 = sphi 0, %s178
      %s182 = sphi 0, %s181
      %s198 = sphi 0, %s182
    $region4: #{tpu_custom_call.1} parent=1 // loop_header_branch
      %19 = sbr.rel (%p17) target = $region8
    $region5: #{tpu_custom_call.1} parent=1 // loop_body
      %s21 = ssub.s32 %s16, 1
      %s22 = ssub.s32 %s16, 2
      %s23 = sadd.s32 %s16, 1
      %s24 = ssub.s32 %s16, %s23
      %p25 = scmp.eq.s32.totalorder %s24, 0
      %s27 = sadd.s32 %s26, 1
      %s28 = scalar_select %p25, %s26, %s27
      %p31 = pneg %p25
      %p32 = scmp.eq.s32.totalorder %s16, 10
      %p33 = por %p31, %p32
      %p34 = scmp.ne.s32.totalorder %s26, %s29
      %p35 = scmp.eq.s32.totalorder %s16, 0
      %p36 = por %p34, %p35
      %p37 = scmp.ne.s32.totalorder %s26, %s29
      %p38 = scmp.eq.s32.totalorder %s21, 10
      %p39 = por %p37, %p38
      %p40 = scmp.ne.s32.totalorder %s29, %s30
      %p41 = scmp.eq.s32.totalorder %s21, 0
      %p42 = por %p40, %p41
      %p43 = scmp.ne.s32.totalorder %s29, %s30
      %p44 = scmp.eq.s32.totalorder %s22, 10
      %p45 = por %p43, %p44
      %p47 = scmp.ne.s32.totalorder %s30, %s46
      %p48 = scmp.eq.s32.totalorder %s22, 0
      %p49 = por %p47, %p48
      %s51 = sadd.s32 %s50, 1
      %p54 = scmp.eq.s32.totalorder %s16, 10
      %p55 = scmp.ne.s32.totalorder %s50, %s52
      %p56 = scmp.eq.s32.totalorder %s16, 0
      %p57 = por %p55, %p56
      %p58 = scmp.ne.s32.totalorder %s50, %s52
      %p59 = scmp.eq.s32.totalorder %s21, 10
      %p60 = por %p58, %p59
      %p61 = scmp.ne.s32.totalorder %s52, %s53
      %p62 = scmp.eq.s32.totalorder %s21, 0
      %p63 = por %p61, %p62
      %p64 = scmp.ne.s32.totalorder %s52, %s53
      %p65 = scmp.eq.s32.totalorder %s22, 10
      %p66 = por %p64, %p65
      %p68 = scmp.ne.s32.totalorder %s53, %s67
      %p69 = scmp.eq.s32.totalorder %s22, 0
      %p70 = por %p68, %p69
      %s72 = sadd.s32 %s71, 1
      %p75 = scmp.eq.s32.totalorder %s16, 10
      %p76 = scmp.ne.s32.totalorder %s71, %s73
      %p77 = scmp.eq.s32.totalorder %s16, 0
      %p78 = por %p76, %p77
      %p79 = scmp.ne.s32.totalorder %s71, %s73
      %p80 = scmp.eq.s32.totalorder %s21, 10
      %p81 = por %p79, %p80
      %p82 = scmp.ne.s32.totalorder %s73, %s74
      %p83 = scmp.eq.s32.totalorder %s21, 0
      %p84 = por %p82, %p83
      %p85 = scmp.ne.s32.totalorder %s73, %s74
      %p86 = scmp.eq.s32.totalorder %s22, 10
      %p87 = por %p85, %p86
      %p89 = scmp.ne.s32.totalorder %s74, %s88
      %p90 = scmp.eq.s32.totalorder %s22, 0
      %p91 = por %p89, %p90
      %s93 = sadd.s32 %s92, 1
      %p96 = scmp.eq.s32.totalorder %s16, 10
      %p97 = scmp.ne.s32.totalorder %s92, %s94
      %p98 = scmp.eq.s32.totalorder %s16, 0
      %p99 = por %p97, %p98
      %p100 = scmp.ne.s32.totalorder %s92, %s94
      %p101 = scmp.eq.s32.totalorder %s21, 10
      %p102 = por %p100, %p101
      %p103 = scmp.ne.s32.totalorder %s94, %s95
      %p104 = scmp.eq.s32.totalorder %s21, 0
      %p105 = por %p103, %p104
      %p106 = scmp.ne.s32.totalorder %s94, %s95
      %p107 = scmp.eq.s32.totalorder %s22, 10
      %p108 = por %p106, %p107
      %p110 = scmp.ne.s32.totalorder %s95, %s109
      %p111 = scmp.eq.s32.totalorder %s22, 0
      %p112 = por %p110, %p111
      %s114 = sadd.s32 %s113, 1
      %p117 = scmp.eq.s32.totalorder %s16, 10
      %p118 = scmp.ne.s32.totalorder %s113, %s115
      %p119 = scmp.eq.s32.totalorder %s16, 0
      %p120 = por %p118, %p119
      %p121 = scmp.ne.s32.totalorder %s113, %s115
      %p122 = scmp.eq.s32.totalorder %s21, 10
      %p123 = por %p121, %p122
      %p124 = scmp.ne.s32.totalorder %s115, %s116
      %p125 = scmp.eq.s32.totalorder %s21, 0
      %p126 = por %p124, %p125
      %p127 = scmp.ne.s32.totalorder %s115, %s116
      %p128 = scmp.eq.s32.totalorder %s22, 10
      %p129 = por %p127, %p128
      %p131 = scmp.ne.s32.totalorder %s116, %s130
      %p132 = scmp.eq.s32.totalorder %s22, 0
      %p133 = por %p131, %p132
      %s135 = sadd.s32 %s134, 1
      %p138 = scmp.eq.s32.totalorder %s16, 10
      %p139 = scmp.ne.s32.totalorder %s134, %s136
      %p140 = scmp.eq.s32.totalorder %s16, 0
      %p141 = por %p139, %p140
      %p142 = scmp.ne.s32.totalorder %s134, %s136
      %p143 = scmp.eq.s32.totalorder %s21, 10
      %p144 = por %p142, %p143
      %p145 = scmp.ne.s32.totalorder %s136, %s137
      %p146 = scmp.eq.s32.totalorder %s21, 0
      %p147 = por %p145, %p146
      %p148 = scmp.ne.s32.totalorder %s136, %s137
      %p149 = scmp.eq.s32.totalorder %s22, 10
      %p150 = por %p148, %p149
      %p152 = scmp.ne.s32.totalorder %s137, %s151
      %p153 = scmp.eq.s32.totalorder %s22, 0
      %p154 = por %p152, %p153
      %s156 = sadd.s32 %s155, 1
      %p159 = scmp.eq.s32.totalorder %s16, 10
      %p160 = scmp.ne.s32.totalorder %s155, %s157
      %p161 = scmp.eq.s32.totalorder %s16, 0
      %p162 = por %p160, %p161
      %p163 = scmp.ne.s32.totalorder %s155, %s157
      %p164 = scmp.eq.s32.totalorder %s21, 10
      %p165 = por %p163, %p164
      %p166 = scmp.ne.s32.totalorder %s157, %s158
      %p167 = scmp.eq.s32.totalorder %s21, 0
      %p168 = por %p166, %p167
      %p169 = scmp.ne.s32.totalorder %s157, %s158
      %p170 = scmp.eq.s32.totalorder %s22, 10
      %p171 = por %p169, %p170
      %p173 = scmp.ne.s32.totalorder %s158, %s172
      %p174 = scmp.eq.s32.totalorder %s22, 0
      %p175 = por %p173, %p174
      %s176 = ssub.s32 %s16, %s23
      %p177 = scmp.eq.s32.totalorder %s176, 0
      %s179 = sadd.s32 %s178, 1
      %s180 = scalar_select %p177, %s178, %s179
      %p183 = pneg %p177
      %p184 = scmp.eq.s32.totalorder %s16, 10
      %p185 = por %p183, %p184
      %p186 = scmp.ne.s32.totalorder %s178, %s181
      %p187 = scmp.eq.s32.totalorder %s16, 0
      %p188 = por %p186, %p187
      %p189 = scmp.ne.s32.totalorder %s178, %s181
      %p190 = scmp.eq.s32.totalorder %s21, 10
      %p191 = por %p189, %p190
      %p192 = scmp.ne.s32.totalorder %s181, %s182
      %p193 = scmp.eq.s32.totalorder %s21, 0
      %p194 = por %p192, %p193
      %p195 = scmp.ne.s32.totalorder %s181, %s182
      %p196 = scmp.eq.s32.totalorder %s22, 10
      %p197 = por %p195, %p196
      %p199 = scmp.ne.s32.totalorder %s182, %s198
      %p200 = scmp.eq.s32.totalorder %s22, 0
      %p201 = por %p199, %p200
      %p202 = scmp.le.s32.totalorder 1, %s16
      %p203 = scmp.lt.s32.totalorder %s16, 12
      %p204 = pnand %p202, %p203
      %p205 = pneg %p204
      // Predicated region
      $region9: #{tpu_custom_call.1} parent=5 // pred_check
        _
      $region10: #{tpu_custom_call.1} parent=5 // pred_check_branch
        %207 = sbr.rel (%p204) target = $region12
      $region11: #{tpu_custom_call.1} parent=5 // pred_region
        %s208 = ssub.s32 %s16, 1
        // Predicated region
        $region13: #{tpu_custom_call.1} parent=11 // pred_check
          %p209 = pneg %p63
        $region14: #{tpu_custom_call.1} parent=11 // pred_check_branch
          %211 = sbr.rel (%p209) target = $region16
        $region15: #{tpu_custom_call.1} parent=11 // pred_region
          _
        $region16: #{tpu_custom_call.1} parent=11 // pred_fallthru
          _
        // Predicated region
        $region17: #{tpu_custom_call.1} parent=11 // pred_check
          %p212 = pneg %p84
        $region18: #{tpu_custom_call.1} parent=11 // pred_check_branch
          %214 = sbr.rel (%p212) target = $region20
        $region19: #{tpu_custom_call.1} parent=11 // pred_region
          _
        $region20: #{tpu_custom_call.1} parent=11 // pred_fallthru
          _
        // Predicated region
        $region21: #{tpu_custom_call.1} parent=11 // pred_check
          %p215 = pneg %p105
        $region22: #{tpu_custom_call.1} parent=11 // pred_check_branch
          %217 = sbr.rel (%p215) target = $region24
        $region23: #{tpu_custom_call.1} parent=11 // pred_region
          _
        $region24: #{tpu_custom_call.1} parent=11 // pred_fallthru
          _
        // Predicated region
        $region25: #{tpu_custom_call.1} parent=11 // pred_check
          %p218 = pneg %p126
        $region26: #{tpu_custom_call.1} parent=11 // pred_check_branch
          %220 = sbr.rel (%p218) target = $region28
        $region27: #{tpu_custom_call.1} parent=11 // pred_region
          _
        $region28: #{tpu_custom_call.1} parent=11 // pred_fallthru
          _
        // Predicated region
        $region29: #{tpu_custom_call.1} parent=11 // pred_check
          %p221 = pneg %p147
        $region30: #{tpu_custom_call.1} parent=11 // pred_check_branch
          %223 = sbr.rel (%p221) target = $region32
        $region31: #{tpu_custom_call.1} parent=11 // pred_region
          _
        $region32: #{tpu_custom_call.1} parent=11 // pred_fallthru
          _
        // Predicated region
        $region33: #{tpu_custom_call.1} parent=11 // pred_check
          %p224 = pneg %p168
        $region34: #{tpu_custom_call.1} parent=11 // pred_check_branch
          %226 = sbr.rel (%p224) target = $region36
        $region35: #{tpu_custom_call.1} parent=11 // pred_region
          _
        $region36: #{tpu_custom_call.1} parent=11 // pred_fallthru
          _
      $region12: #{tpu_custom_call.1} parent=5 // pred_fallthru
        _
      %p227 = scmp.lt.s32.totalorder %s16, 11
      // Predicated region
      $region37: #{tpu_custom_call.1} parent=5 // pred_check
        %p228 = pneg %p227
      $region38: #{tpu_custom_call.1} parent=5 // pred_check_branch
        %230 = sbr.rel (%p228) target = $region40
      $region39: #{tpu_custom_call.1} parent=5 // pred_region
        // Predicated region
        $region41: #{tpu_custom_call.1} parent=39 // pred_check
          %p231 = pneg %p36
        $region42: #{tpu_custom_call.1} parent=39 // pred_check_branch
          %233 = sbr.rel (%p231) target = $region44
        $region43: #{tpu_custom_call.1} parent=39 // pred_region
          %s234 = smul.u32 3, %s16
          %p235 = scmp.lt.s32.totalorder %s234, 32
          %s236 = scalar_select %p235, %s234, 32
          %s237 = smul.addr %s236, 8
          %s238 = scalar_lea.vmem %s0, %s237
          %s239 = smul.u32 3, %s16
        $region44: #{tpu_custom_call.1} parent=39 // pred_fallthru
          _
      $region40: #{tpu_custom_call.1} parent=5 // pred_fallthru
        _
      %p240 = scmp.le.s32.totalorder 1, %s16
      %p241 = scmp.lt.s32.totalorder %s16, 12
      %p242 = pnand %p240, %p241
      %p243 = pneg %p242
      // Predicated region
      $region45: #{tpu_custom_call.1} parent=5 // pred_check
        _
      $region46: #{tpu_custom_call.1} parent=5 // pred_check_branch
        %245 = sbr.rel (%p242) target = $region48
      $region47: #{tpu_custom_call.1} parent=5 // pred_region
        %s246 = ssub.s32 %s16, 1
        %s247 = smul.u32 3, %s21
        %p248 = scmp.lt.s32.totalorder %s247, 32
        %s249 = scalar_select %p248, %s247, 32
        %s250 = smul.addr %s249, 8
        %s251 = scalar_lea.vmem %s0, %s250
        %p252 = pneg %p42
        %p253 = pneg %p39
        %p254 = pneg %p63
        %p255 = pneg %p60
        %p256 = pneg %p84
        %p257 = pneg %p81
        %p258 = pneg %p105
        %p259 = pneg %p102
        %p260 = pneg %p126
        %p261 = pneg %p123
        %p262 = pneg %p147
        %p263 = pneg %p144
        %p264 = pneg %p168
        %p265 = pneg %p165
        %p266 = pneg %p194
        %p267 = pneg %p191
        %s268 = sand.u32 %s181, 1
        %s269 = scalar_lea.sflag [#allocation3], %s268
        %s270 = sand.u32 %s181, 1
        %s271 = smul.addr %s270, 24
        %s272 = scalar_lea.vmem [#allocation2], %s271
        %s273 = smul.u32 3, %s21
        %p274 = scmp.lt.s32.totalorder %s273, 32
        %s275 = scalar_select %p274, %s273, 32
        %s276 = smul.addr %s275, 8
        %s277 = scalar_lea.vmem %s0, %s276
        %s278 = smul.u32 3, %s21
        %s279 = smul.u32 3, %s21
        %v281 = vld [vmem:[%s277] sm:$0xff]
        %v282 = vld [vmem:[%s277 + $0x8] sm:$0xff]
        %v283 = vld [vmem:[%s277 + $0x10] sm:$0xff]
        %v284 = vld [vmem:[%s1] sm:$0xf]
        %v285 = vld [vmem:[%s1 + $0x4] sm:$0xf]
        %v286 = vld [vmem:[%s1 + $0x8] sm:$0xf]
        %v287 = vld [vmem:[%s1 + $0xc] sm:$0xf]
        %v288 = vld [vmem:[%s1 + $0x10] sm:$0xf]
        %v289 = vld [vmem:[%s1 + $0x14] sm:$0xf]
        %v290 = vld [vmem:[%s1 + $0x18] sm:$0xf]
        %v291 = vld [vmem:[%s1 + $0x1c] sm:$0xf]
        %v292 = vld [vmem:[%s1 + $0x20] sm:$0xf]
        %v293 = vld [vmem:[%s1 + $0x24] sm:$0xf]
        %v294 = vld [vmem:[%s1 + $0x28] sm:$0xf]
        %v295 = vld [vmem:[%s1 + $0x2c] sm:$0xf]
        %v296 = vld [vmem:[%s1 + $0x30] sm:$0xf]
        %v297 = vld [vmem:[%s1 + $0x34] sm:$0xf]
        %v298 = vld [vmem:[%s1 + $0x38] sm:$0xf]
        %v299 = vld [vmem:[%s1 + $0x3c] sm:$0xf]
        %v300 = vld [vmem:[%s1 + $0x40] sm:$0xf]
        %v301 = vld [vmem:[%s1 + $0x44] sm:$0xf]
        %v302 = vld [vmem:[%s1 + $0x48] sm:$0xf]
        %v303 = vld [vmem:[%s1 + $0x4c] sm:$0xf]
        %v304 = vld [vmem:[%s1 + $0x50] sm:$0xf]
        %v305 = vld [vmem:[%s1 + $0x54] sm:$0xf]
        %v306 = vld [vmem:[%s1 + $0x58] sm:$0xf]
        %v307 = vld [vmem:[%s1 + $0x5c] sm:$0xf]
        %v308 = vld [vmem:[%s1 + $0x60] sm:$0xf]
        %v309 = vld [vmem:[%s1 + $0x64] sm:$0xf]
        %v310 = vld [vmem:[%s1 + $0x68] sm:$0xf]
        %v311 = vld [vmem:[%s1 + $0x6c] sm:$0xf]
        %v312 = vld [vmem:[%s1 + $0x70] sm:$0xf]
        %v313 = vld [vmem:[%s1 + $0x74] sm:$0xf]
        %v314 = vld [vmem:[%s1 + $0x78] sm:$0xf]
        %v315 = vld [vmem:[%s1 + $0x7c] sm:$0xf]
        %v316 = vld [vmem:[%s1 + $0x80] sm:$0xf]
        %v317 = vld [vmem:[%s1 + $0x84] sm:$0xf]
        %v318 = vld [vmem:[%s1 + $0x88] sm:$0xf]
        %v319 = vld [vmem:[%s1 + $0x8c] sm:$0xf]
        %v320 = vld [vmem:[%s1 + $0x90] sm:$0xf]
        %v321 = vld [vmem:[%s1 + $0x94] sm:$0xf]
        %v322 = vld [vmem:[%s1 + $0x98] sm:$0xf]
        %v323 = vld [vmem:[%s1 + $0x9c] sm:$0xf]
        %v324 = vld [vmem:[%s1 + $0xa0] sm:$0xf]
        %v325 = vld [vmem:[%s1 + $0xa4] sm:$0xf]
        %v326 = vld [vmem:[%s1 + $0xa8] sm:$0xf]
        %v327 = vld [vmem:[%s1 + $0xac] sm:$0xf]
        %v328 = vld [vmem:[%s1 + $0xb0] sm:$0xf]
        %v329 = vld [vmem:[%s1 + $0xb4] sm:$0xf]
        %v330 = vld [vmem:[%s1 + $0xb8] sm:$0xf]
        %v331 = vld [vmem:[%s1 + $0xbc] sm:$0xf]
        %v332 = vld [vmem:[%s2] sm:$0xf]
        %v333 = vld [vmem:[%s2 + $0x4] sm:$0xf]
        %v334 = vld [vmem:[%s2 + $0x8] sm:$0xf]
        %v335 = vld [vmem:[%s2 + $0xc] sm:$0xf]
        %v336 = vld [vmem:[%s2 + $0x10] sm:$0xf]
        %v337 = vld [vmem:[%s2 + $0x14] sm:$0xf]
        %v338 = vld [vmem:[%s2 + $0x18] sm:$0xf]
        %v339 = vld [vmem:[%s2 + $0x1c] sm:$0xf]
        %v340 = vld [vmem:[%s3] sm:$0x1]
        %v341 = vlaneseq
        %v342 = vand.u32 %v341, 127
        %v343 = vadd.s32 %v342, 128
        %v344 = vadd.s32 %v342, 256
        %345 = vset.pattern.permute.xlu0 0
        %346 = vperm.xlu0 %345, %v281
        %v347 = vpop.permute.xlu0 %346
        %348 = vset.pattern.permute.xlu0 0
        %349 = vperm.xlu0 %348, %v282
        %v350 = vpop.permute.xlu0 %349
        %351 = vset.pattern.permute.xlu0 0
        %352 = vperm.xlu0 %351, %v283
        %v353 = vpop.permute.xlu0 %352
        %vm354 = vcmp.eq.s32.totalorder %v342, %v347
        %vm355 = vcmp.eq.s32.totalorder %v343, %v347
        %vm356 = vcmp.eq.s32.totalorder %v344, %v347
        %vm357 = vcmp.eq.s32.totalorder %v342, %v350
        %vm358 = vcmp.eq.s32.totalorder %v343, %v350
        %vm359 = vcmp.eq.s32.totalorder %v344, %v350
        %vm360 = vcmp.eq.s32.totalorder %v342, %v353
        %vm361 = vcmp.eq.s32.totalorder %v343, %v353
        %vm362 = vcmp.eq.s32.totalorder %v344, %v353
        %v363 = vsel %vm354, 1, 0
        %v364 = vsel %vm355, 1, 0
        %v365 = vsel %vm356, 1, 0
        %v366 = vsel %vm357, 1, 0
        %v367 = vsel %vm358, 1, 0
        %v368 = vsel %vm359, 1, 0
        %v369 = vsel %vm360, 1, 0
        %v370 = vsel %vm361, 1, 0
        %v371 = vsel %vm362, 1, 0
        %v372 = vcvt.s32.f32 %v363
        %v373 = vcvt.s32.f32 %v364
        %v374 = vcvt.s32.f32 %v365
        %v375 = vcvt.s32.f32 %v366
        %v376 = vcvt.s32.f32 %v367
        %v377 = vcvt.s32.f32 %v368
        %v378 = vcvt.s32.f32 %v369
        %v379 = vcvt.s32.f32 %v370
        %v380 = vcvt.s32.f32 %v371
        %v381 = vpack.c.bf16 %v375, %v372
        %v382 = vpack.c.bf16 %v376, %v373
        %v383 = vpack.c.bf16 %v377, %v374
        %v384 = vpack.c.bf16 %v378, %v378
        %v385 = vpack.c.bf16 %v379, %v379
        %v386 = vpack.c.bf16 %v380, %v380
        %v435 = vunpack.c.l.b16 %v284
        %v436 = vunpack.c.l.b16 %v285
        %v437 = vunpack.c.l.b16 %v286
        %v438 = vunpack.c.l.b16 %v287
        %v439 = vunpack.c.l.b16 %v288
        %v440 = vunpack.c.l.b16 %v289
        %v441 = vunpack.c.l.b16 %v290
        %v442 = vunpack.c.l.b16 %v291
        %v443 = vunpack.c.l.b16 %v292
        %v444 = vunpack.c.l.b16 %v293
        %v445 = vunpack.c.l.b16 %v294
        %v446 = vunpack.c.l.b16 %v295
        %v447 = vunpack.c.l.b16 %v296
        %v448 = vunpack.c.l.b16 %v297
        %v449 = vunpack.c.l.b16 %v298
        %v450 = vunpack.c.l.b16 %v299
        %v451 = vunpack.c.l.b16 %v300
        %v452 = vunpack.c.l.b16 %v301
        %v453 = vunpack.c.l.b16 %v302
        %v454 = vunpack.c.l.b16 %v303
        %v455 = vunpack.c.l.b16 %v304
        %v456 = vunpack.c.l.b16 %v305
        %v457 = vunpack.c.l.b16 %v306
        %v458 = vunpack.c.l.b16 %v307
        %v459 = vunpack.c.l.b16 %v308
        %v460 = vunpack.c.l.b16 %v309
        %v461 = vunpack.c.l.b16 %v310
        %v462 = vunpack.c.l.b16 %v311
        %v463 = vunpack.c.l.b16 %v312
        %v464 = vunpack.c.l.b16 %v313
        %v465 = vunpack.c.l.b16 %v314
        %v466 = vunpack.c.l.b16 %v315
        %v467 = vunpack.c.l.b16 %v316
        %v468 = vunpack.c.l.b16 %v317
        %v469 = vunpack.c.l.b16 %v318
        %v470 = vunpack.c.l.b16 %v319
        %v471 = vunpack.c.l.b16 %v320
        %v472 = vunpack.c.l.b16 %v321
        %v473 = vunpack.c.l.b16 %v322
        %v474 = vunpack.c.l.b16 %v323
        %v475 = vunpack.c.l.b16 %v324
        %v476 = vunpack.c.l.b16 %v325
        %v477 = vunpack.c.l.b16 %v326
        %v478 = vunpack.c.l.b16 %v327
        %v479 = vunpack.c.l.b16 %v328
        %v480 = vunpack.c.l.b16 %v329
        %v481 = vunpack.c.l.b16 %v330
        %v482 = vunpack.c.l.b16 %v331
        %v483 = vpack.c.b16 %v436, %v435
        %v484 = vpack.c.b16 %v438, %v437
        %v485 = vpack.c.b16 %v440, %v439
        %v486 = vpack.c.b16 %v442, %v441
        %v487 = vpack.c.b16 %v444, %v443
        %v488 = vpack.c.b16 %v446, %v445
        %v489 = vpack.c.b16 %v448, %v447
        %v490 = vpack.c.b16 %v450, %v449
        %v491 = vpack.c.b16 %v452, %v451
        %v492 = vpack.c.b16 %v454, %v453
        %v493 = vpack.c.b16 %v456, %v455
        %v494 = vpack.c.b16 %v458, %v457
        %v495 = vpack.c.b16 %v460, %v459
        %v496 = vpack.c.b16 %v462, %v461
        %v497 = vpack.c.b16 %v464, %v463
        %v498 = vpack.c.b16 %v466, %v465
        %v499 = vpack.c.b16 %v468, %v467
        %v500 = vpack.c.b16 %v470, %v469
        %v501 = vpack.c.b16 %v472, %v471
        %v502 = vpack.c.b16 %v474, %v473
        %v503 = vpack.c.b16 %v476, %v475
        %v504 = vpack.c.b16 %v478, %v477
        %v505 = vpack.c.b16 %v480, %v479
        %v506 = vpack.c.b16 %v482, %v481
        %531 = vmatprep.subr.bf16.mxu0 0
        %532 = vmatpush1.bf16.msra.mxu0 %v483
        %533 = vmatprep.subr.bf16.mxu0 0
        %534 = vmatpush1.bf16.msra.mxu0 %v484
        %535 = vmatprep.subr.bf16.mxu0 0
        %536 = vmatpush1.bf16.msra.mxu0 %v485
        %537 = vmatprep.subr.bf16.mxu0 0
        %538 = vmatpush1.bf16.msra.mxu0 %v486
        %539 = vmatprep.subr.bf16.mxu0 0
        %540 = vmatpush1.bf16.msra.mxu0 %v487
        %541 = vmatprep.subr.bf16.mxu0 0
        %542 = vmatpush1.bf16.msra.mxu0 %v488
        %543 = vmatprep.subr.bf16.mxu0 0
        %544 = vmatpush1.bf16.msra.mxu0 %v489
        %545 = vmatprep.subr.bf16.mxu0 0
        %546 = vmatpush1.bf16.msra.mxu0 %v490
        %547 = vmatprep.subr.bf16.mxu0 0
        %548 = vmatpush1.bf16.msra.mxu0 %v491
        %549 = vmatprep.subr.bf16.mxu0 0
        %550 = vmatpush1.bf16.msra.mxu0 %v492
        %551 = vmatprep.subr.bf16.mxu0 0
        %552 = vmatpush1.bf16.msra.mxu0 %v493
        %553 = vmatprep.subr.bf16.mxu0 0
        %554 = vmatpush1.bf16.msra.mxu0 %v494
        %555 = vmatprep.subr.bf16.mxu0 0
        %556 = vmatpush1.bf16.msra.mxu0 %v495
        %557 = vmatprep.subr.bf16.mxu0 0
        %558 = vmatpush1.bf16.msra.mxu0 %v496
        %559 = vmatprep.subr.bf16.mxu0 0
        %560 = vmatpush1.bf16.msra.mxu0 %v497
        %561 = vmatprep.subr.bf16.mxu0 0
        %562 = vmatpush1.bf16.msra.mxu0 %v498
        %563 = vmatprep.mubr.bf16.mxu0 %v382
        %564 = vmatmul.mubr.bf16.gmra.mrb[0].mxu0 %v381
        %v565 = vpop.f32.mrb[0].mxu0
        %v566 = vadd.f32 0.0, %v565
        %v567 = vpop.f32.mrb[0].mxu0
        %v568 = vpop.f32.mrb[0].mxu0
        %v569 = vadd.f32 0.0, %v568
        %v570 = vpop.f32.mrb[0].mxu0
        %571 = vmatprep.mubr.bf16.mxu0 %v385
        %572 = vmatmul.mubr.bf16.gmra.mrb[0].mxu0 %v384
        %v573 = vpop.f32.mrb[0].mxu0
        %v574 = vadd.f32 0.0, %v573
        %v575 = vpop.f32.mrb[0].mxu0
        %v576 = vpop.f32.mrb[0].mxu0
        %v577 = vpop.f32.mrb[0].mxu0
        %578 = vdwg.mxu0
        %579 = vmatprep.subr.bf16.mxu0 0
        %580 = vmatpush1.bf16.msra.mxu0 %v499
        %581 = vmatprep.subr.bf16.mxu0 0
        %582 = vmatpush1.bf16.msra.mxu0 %v500
        %583 = vmatprep.subr.bf16.mxu0 0
        %584 = vmatpush1.bf16.msra.mxu0 %v501
        %585 = vmatprep.subr.bf16.mxu0 0
        %586 = vmatpush1.bf16.msra.mxu0 %v502
        %587 = vmatprep.subr.bf16.mxu0 0
        %588 = vmatpush1.bf16.msra.mxu0 %v503
        %589 = vmatprep.subr.bf16.mxu0 0
        %590 = vmatpush1.bf16.msra.mxu0 %v504
        %591 = vmatprep.subr.bf16.mxu0 0
        %592 = vmatpush1.bf16.msra.mxu0 %v505
        %593 = vmatprep.subr.bf16.mxu0 0
        %594 = vmatpush1.bf16.msra.mxu0 %v506
        %595 = vmatprep.subr.bf16.mxu0 0
        %596 = vmatpush1.bf16.msra.mxu0 0
        %597 = vmatprep.subr.bf16.mxu0 0
        %598 = vmatpush1.bf16.msra.mxu0 0
        %599 = vmatprep.subr.bf16.mxu0 0
        %600 = vmatpush1.bf16.msra.mxu0 0
        %601 = vmatprep.subr.bf16.mxu0 0
        %602 = vmatpush1.bf16.msra.mxu0 0
        %603 = vmatprep.subr.bf16.mxu0 0
        %604 = vmatpush1.bf16.msra.mxu0 0
        %605 = vmatprep.subr.bf16.mxu0 0
        %606 = vmatpush1.bf16.msra.mxu0 0
        %607 = vmatprep.subr.bf16.mxu0 0
        %608 = vmatpush1.bf16.msra.mxu0 0
        %609 = vmatprep.subr.bf16.mxu0 0
        %610 = vmatpush1.bf16.msra.mxu0 0
        %611 = vmatprep.mubr.bf16.mxu0 0
        %612 = vmatmul.mubr.bf16.gmra.mrb[0].mxu0 %v383
        %v613 = vpop.f32.mrb[0].mxu0
        %v614 = vadd.f32 %v566, %v613
        %v615 = vpop.f32.mrb[0].mxu0
        %v616 = vpop.f32.mrb[0].mxu0
        %v617 = vadd.f32 %v569, %v616
        %v618 = vpop.f32.mrb[0].mxu0
        %619 = vmatprep.mubr.bf16.mxu0 0
        %620 = vmatmul.mubr.bf16.gmra.mrb[0].mxu0 %v386
        %v621 = vpop.f32.mrb[0].mxu0
        %v622 = vadd.f32 %v574, %v621
        %v623 = vpop.f32.mrb[0].mxu0
        %v624 = vpop.f32.mrb[0].mxu0
        %v625 = vpop.f32.mrb[0].mxu0
        %626 = vdwg.mxu0
        %v627 = vpack.c.bf16 %v617, %v614
        %v628 = vpack.c.bf16 %v622, %v622
        %v630 = vlaneseq
        %v631 = vshrl.u32 %v630, 7
        %v632 = vsub.s32 0, %v631
        %v633 = vrot.slane %v340, %v632
        %v643 = vunpack.c.l.b16 %v332
        %v644 = vunpack.c.l.b16 %v333
        %v645 = vunpack.c.l.b16 %v334
        %v646 = vunpack.c.l.b16 %v335
        %v647 = vunpack.c.l.b16 %v336
        %v648 = vunpack.c.l.b16 %v337
        %v649 = vunpack.c.l.b16 %v338
        %v650 = vunpack.c.l.b16 %v339
        %v651 = vpack.c.b16 %v644, %v643
        %v652 = vpack.c.b16 %v646, %v645
        %v653 = vpack.c.b16 %v648, %v647
        %v654 = vpack.c.b16 %v650, %v649
        %vm659 = vcmask 523264
        %v661 = vsel %vm659, %v627, 0
        %v664 = vsel %vm659, %v628, 0
        %666 = vmatprep.subr.bf16.mxu0 0
        %667 = vmatpush1.bf16.msra.mxu0 %v651
        %668 = vmatprep.subr.bf16.mxu0 0
        %669 = vmatpush1.bf16.msra.mxu0 %v652
        %670 = vmatprep.subr.bf16.mxu0 0
        %671 = vmatpush1.bf16.msra.mxu0 %v653
        %672 = vmatprep.subr.bf16.mxu0 0
        %673 = vmatpush1.bf16.msra.mxu0 %v654
        %674 = vmatprep.subr.bf16.mxu0 0
        %675 = vmatpush1.bf16.msra.mxu0 0
        %676 = vmatprep.subr.bf16.mxu0 0
        %677 = vmatpush1.bf16.msra.mxu0 0
        %678 = vmatprep.subr.bf16.mxu0 0
        %679 = vmatpush1.bf16.msra.mxu0 0
        %680 = vmatprep.subr.bf16.mxu0 0
        %681 = vmatpush1.bf16.msra.mxu0 0
        %682 = vmatprep.subr.bf16.mxu0 0
        %683 = vmatpush1.bf16.msra.mxu0 0
        %684 = vmatprep.subr.bf16.mxu0 0
        %685 = vmatpush1.bf16.msra.mxu0 0
        %686 = vmatprep.subr.bf16.mxu0 0
        %687 = vmatpush1.bf16.msra.mxu0 0
        %688 = vmatprep.subr.bf16.mxu0 0
        %689 = vmatpush1.bf16.msra.mxu0 0
        %690 = vmatprep.subr.bf16.mxu0 0
        %691 = vmatpush1.bf16.msra.mxu0 0
        %692 = vmatprep.subr.bf16.mxu0 0
        %693 = vmatpush1.bf16.msra.mxu0 0
        %694 = vmatprep.subr.bf16.mxu0 0
        %695 = vmatpush1.bf16.msra.mxu0 0
        %696 = vmatprep.subr.bf16.mxu0 0
        %697 = vmatpush1.bf16.msra.mxu0 0
        %698 = vmatprep.mubr.bf16.mxu0 0
        %699 = vmatmul.mubr.bf16.gmra.mrb[0].mxu0 %v661
        %v700 = vpop.f32.mrb[0].mxu0
        %v701 = vadd.f32 %v633, %v700
        %v702 = vpop.f32.mrb[0].mxu0
        %v703 = vpop.f32.mrb[0].mxu0
        %v704 = vadd.f32 %v633, %v703
        %v705 = vpop.f32.mrb[0].mxu0
        %706 = vmatprep.mubr.bf16.mxu0 0
        %707 = vmatmul.mubr.bf16.gmra.mrb[0].mxu0 %v664
        %v708 = vpop.f32.mrb[0].mxu0
        %v709 = vadd.f32 %v633, %v708
        %v710 = vpop.f32.mrb[0].mxu0
        %v711 = vpop.f32.mrb[0].mxu0
        %v712 = vpop.f32.mrb[0].mxu0
        %713 = vdwg.mxu0
        %v714 = vmax.f32 %v701, 0.0
        %v715 = vmax.f32 %v704, 0.0
        %v716 = vmax.f32 %v709, 0.0
        %v717 = vpack.c.bf16 %v715, %v714
        %v718 = vpack.c.bf16 %v716, %v716
        %v719 = vld [vmem:[%s4] sm:$0xf]
        %v720 = vld [vmem:[%s4 + $0x4] sm:$0xf]
        %v721 = vld [vmem:[%s4 + $0x8] sm:$0xf]
        %v722 = vld [vmem:[%s4 + $0xc] sm:$0xf]
        %v723 = vld [vmem:[%s4 + $0x10] sm:$0xf]
        %v724 = vld [vmem:[%s4 + $0x14] sm:$0xf]
        %v725 = vld [vmem:[%s4 + $0x18] sm:$0xf]
        %v726 = vld [vmem:[%s4 + $0x1c] sm:$0xf]
        %v727 = vld [vmem:[%s5] sm:$0xf]
        %v728 = vld [vmem:[%s5 + $0x4] sm:$0xf]
        %v729 = vld [vmem:[%s5 + $0x8] sm:$0xf]
        %v730 = vld [vmem:[%s5 + $0xc] sm:$0xf]
        %v731 = vld [vmem:[%s5 + $0x10] sm:$0xf]
        %v732 = vld [vmem:[%s5 + $0x14] sm:$0xf]
        %v733 = vld [vmem:[%s5 + $0x18] sm:$0xf]
        %v734 = vld [vmem:[%s5 + $0x1c] sm:$0xf]
        %v743 = vunpack.c.l.b16 %v727
        %v744 = vunpack.c.l.b16 %v728
        %v745 = vunpack.c.l.b16 %v729
        %v746 = vunpack.c.l.b16 %v730
        %v747 = vunpack.c.l.b16 %v731
        %v748 = vunpack.c.l.b16 %v732
        %v749 = vunpack.c.l.b16 %v733
        %v750 = vunpack.c.l.b16 %v734
        %v751 = vpack.c.b16 %v744, %v743
        %v752 = vpack.c.b16 %v746, %v745
        %v753 = vpack.c.b16 %v748, %v747
        %v754 = vpack.c.b16 %v750, %v749
        %759 = vmatprep.subr.bf16.mxu0 0
        %760 = vmatpush1.bf16.msra.mxu0 %v751
        %761 = vmatprep.subr.bf16.mxu0 0
        %762 = vmatpush1.bf16.msra.mxu0 %v752
        %763 = vmatprep.subr.bf16.mxu0 0
        %764 = vmatpush1.bf16.msra.mxu0 %v753
        %765 = vmatprep.subr.bf16.mxu0 0
        %766 = vmatpush1.bf16.msra.mxu0 %v754
        %767 = vmatprep.subr.bf16.mxu0 0
        %768 = vmatpush1.bf16.msra.mxu0 0
        %769 = vmatprep.subr.bf16.mxu0 0
        %770 = vmatpush1.bf16.msra.mxu0 0
        %771 = vmatprep.subr.bf16.mxu0 0
        %772 = vmatpush1.bf16.msra.mxu0 0
        %773 = vmatprep.subr.bf16.mxu0 0
        %774 = vmatpush1.bf16.msra.mxu0 0
        %775 = vmatprep.subr.bf16.mxu0 0
        %776 = vmatpush1.bf16.msra.mxu0 0
        %777 = vmatprep.subr.bf16.mxu0 0
        %778 = vmatpush1.bf16.msra.mxu0 0
        %779 = vmatprep.subr.bf16.mxu0 0
        %780 = vmatpush1.bf16.msra.mxu0 0
        %781 = vmatprep.subr.bf16.mxu0 0
        %782 = vmatpush1.bf16.msra.mxu0 0
        %783 = vmatprep.subr.bf16.mxu0 0
        %784 = vmatpush1.bf16.msra.mxu0 0
        %785 = vmatprep.subr.bf16.mxu0 0
        %786 = vmatpush1.bf16.msra.mxu0 0
        %787 = vmatprep.subr.bf16.mxu0 0
        %788 = vmatpush1.bf16.msra.mxu0 0
        %789 = vmatprep.subr.bf16.mxu0 0
        %790 = vmatpush1.bf16.msra.mxu0 0
        %791 = vmatprep.mubr.bf16.mxu0 0
        %792 = vmatmul.mubr.bf16.gmra.mrb[0].mxu0 %v661
        %v793 = vpop.f32.mrb[0].mxu0
        %v794 = vadd.f32 0.0, %v793
        %v795 = vpop.f32.mrb[0].mxu0
        %v796 = vpop.f32.mrb[0].mxu0
        %v797 = vadd.f32 0.0, %v796
        %v798 = vpop.f32.mrb[0].mxu0
        %799 = vmatprep.mubr.bf16.mxu0 0
        %800 = vmatmul.mubr.bf16.gmra.mrb[0].mxu0 %v664
        %v801 = vpop.f32.mrb[0].mxu0
        %v802 = vadd.f32 0.0, %v801
        %v803 = vpop.f32.mrb[0].mxu0
        %v804 = vpop.f32.mrb[0].mxu0
        %v805 = vpop.f32.mrb[0].mxu0
        %806 = vdwg.mxu0
        %v815 = vunpack.c.l.b16 %v719
        %v816 = vunpack.c.l.b16 %v720
        %v817 = vunpack.c.l.b16 %v721
        %v818 = vunpack.c.l.b16 %v722
        %v819 = vunpack.c.l.b16 %v723
        %v820 = vunpack.c.l.b16 %v724
        %v821 = vunpack.c.l.b16 %v725
        %v822 = vunpack.c.l.b16 %v726
        %v823 = vpack.c.b16 %v816, %v815
        %v824 = vpack.c.b16 %v818, %v817
        %v825 = vpack.c.b16 %v820, %v819
        %v826 = vpack.c.b16 %v822, %v821
        %v832 = vsel %vm659, %v717, 0
        %v835 = vsel %vm659, %v718, 0
        %837 = vmatprep.subr.bf16.mxu0 0
        %838 = vmatpush1.bf16.msra.mxu0 %v823
        %839 = vmatprep.subr.bf16.mxu0 0
        %840 = vmatpush1.bf16.msra.mxu0 %v824
        %841 = vmatprep.subr.bf16.mxu0 0
        %842 = vmatpush1.bf16.msra.mxu0 %v825
        %843 = vmatprep.subr.bf16.mxu0 0
        %844 = vmatpush1.bf16.msra.mxu0 %v826
        %845 = vmatprep.subr.bf16.mxu0 0
        %846 = vmatpush1.bf16.msra.mxu0 0
        %847 = vmatprep.subr.bf16.mxu0 0
        %848 = vmatpush1.bf16.msra.mxu0 0
        %849 = vmatprep.subr.bf16.mxu0 0
        %850 = vmatpush1.bf16.msra.mxu0 0
        %851 = vmatprep.subr.bf16.mxu0 0
        %852 = vmatpush1.bf16.msra.mxu0 0
        %853 = vmatprep.subr.bf16.mxu0 0
        %854 = vmatpush1.bf16.msra.mxu0 0
        %855 = vmatprep.subr.bf16.mxu0 0
        %856 = vmatpush1.bf16.msra.mxu0 0
        %857 = vmatprep.subr.bf16.mxu0 0
        %858 = vmatpush1.bf16.msra.mxu0 0
        %859 = vmatprep.subr.bf16.mxu0 0
        %860 = vmatpush1.bf16.msra.mxu0 0
        %861 = vmatprep.subr.bf16.mxu0 0
        %862 = vmatpush1.bf16.msra.mxu0 0
        %863 = vmatprep.subr.bf16.mxu0 0
        %864 = vmatpush1.bf16.msra.mxu0 0
        %865 = vmatprep.subr.bf16.mxu0 0
        %866 = vmatpush1.bf16.msra.mxu0 0
        %867 = vmatprep.subr.bf16.mxu0 0
        %868 = vmatpush1.bf16.msra.mxu0 0
        %869 = vmatprep.mubr.bf16.mxu0 0
        %870 = vmatmul.mubr.bf16.gmra.mrb[0].mxu0 %v832
        %v871 = vpop.f32.mrb[0].mxu0
        %v872 = vadd.f32 %v794, %v871
        %v873 = vpop.f32.mrb[0].mxu0
        %v874 = vpop.f32.mrb[0].mxu0
        %v875 = vadd.f32 %v797, %v874
        %v876 = vpop.f32.mrb[0].mxu0
        %877 = vmatprep.mubr.bf16.mxu0 0
        %878 = vmatmul.mubr.bf16.gmra.mrb[0].mxu0 %v835
        %v879 = vpop.f32.mrb[0].mxu0
        %v880 = vadd.f32 %v802, %v879
        %v881 = vpop.f32.mrb[0].mxu0
        %v882 = vpop.f32.mrb[0].mxu0
        %v883 = vpop.f32.mrb[0].mxu0
        %884 = vdwg.mxu0
        %885 = vset.pattern.permute.xlu0 1
        %886 = vperm.xlu0 %885, %v281
        %v887 = vpop.permute.xlu0 %886
        %888 = vset.pattern.permute.xlu0 1
        %889 = vperm.xlu0 %888, %v282
        %v890 = vpop.permute.xlu0 %889
        %891 = vset.pattern.permute.xlu0 1
        %892 = vperm.xlu0 %891, %v283
        %v893 = vpop.permute.xlu0 %892
        %vm894 = vcmp.eq.s32.totalorder %v342, %v887
        %vm895 = vcmp.eq.s32.totalorder %v343, %v887
        %vm896 = vcmp.eq.s32.totalorder %v344, %v887
        %vm897 = vcmp.eq.s32.totalorder %v342, %v890
        %vm898 = vcmp.eq.s32.totalorder %v343, %v890
        %vm899 = vcmp.eq.s32.totalorder %v344, %v890
        %vm900 = vcmp.eq.s32.totalorder %v342, %v893
        %vm901 = vcmp.eq.s32.totalorder %v343, %v893
        %vm902 = vcmp.eq.s32.totalorder %v344, %v893
        %v903 = vsel %vm894, 1, 0
        %v904 = vsel %vm895, 1, 0
        %v905 = vsel %vm896, 1, 0
        %v906 = vsel %vm897, 1, 0
        %v907 = vsel %vm898, 1, 0
        %v908 = vsel %vm899, 1, 0
        %v909 = vsel %vm900, 1, 0
        %v910 = vsel %vm901, 1, 0
        %v911 = vsel %vm902, 1, 0
        %v912 = vcvt.s32.f32 %v903
        %v913 = vcvt.s32.f32 %v904
        %v914 = vcvt.s32.f32 %v905
        %v915 = vcvt.s32.f32 %v906
        %v916 = vcvt.s32.f32 %v907
        %v917 = vcvt.s32.f32 %v908
        %v918 = vcvt.s32.f32 %v909
        %v919 = vcvt.s32.f32 %v910
        %v920 = vcvt.s32.f32 %v911
        %v921 = vpack.c.bf16 %v915, %v912
        %v922 = vpack.c.bf16 %v916, %v913
        %v923 = vpack.c.bf16 %v917, %v914
        %v924 = vpack.c.bf16 %v918, %v918
        %v925 = vpack.c.bf16 %v919, %v919
        %v926 = vpack.c.bf16 %v920, %v920
        %927 = vmatprep.subr.bf16.mxu0 0
        %928 = vmatpush1.bf16.msra.mxu0 %v483
        %929 = vmatprep.subr.bf16.mxu0 0
        %930 = vmatpush1.bf16.msra.mxu0 %v484
        %931 = vmatprep.subr.bf16.mxu0 0
        %932 = vmatpush1.bf16.msra.mxu0 %v485
        %933 = vmatprep.subr.bf16.mxu0 0
        %934 = vmatpush1.bf16.msra.mxu0 %v486
        %935 = vmatprep.subr.bf16.mxu0 0
        %936 = vmatpush1.bf16.msra.mxu0 %v487
        %937 = vmatprep.subr.bf16.mxu0 0
        %938 = vmatpush1.bf16.msra.mxu0 %v488
        %939 = vmatprep.subr.bf16.mxu0 0
        %940 = vmatpush1.bf16.msra.mxu0 %v489
        %941 = vmatprep.subr.bf16.mxu0 0
        %942 = vmatpush1.bf16.msra.mxu0 %v490
        %943 = vmatprep.subr.bf16.mxu0 0
        %944 = vmatpush1.bf16.msra.mxu0 %v491
        %945 = vmatprep.subr.bf16.mxu0 0
        %946 = vmatpush1.bf16.msra.mxu0 %v492
        %947 = vmatprep.subr.bf16.mxu0 0
        %948 = vmatpush1.bf16.msra.mxu0 %v493
        %949 = vmatprep.subr.bf16.mxu0 0
        %950 = vmatpush1.bf16.msra.mxu0 %v494
        %951 = vmatprep.subr.bf16.mxu0 0
        %952 = vmatpush1.bf16.msra.mxu0 %v495
        %953 = vmatprep.subr.bf16.mxu0 0
        %954 = vmatpush1.bf16.msra.mxu0 %v496
        %955 = vmatprep.subr.bf16.mxu0 0
        %956 = vmatpush1.bf16.msra.mxu0 %v497
        %957 = vmatprep.subr.bf16.mxu0 0
        %958 = vmatpush1.bf16.msra.mxu0 %v498
        %959 = vmatprep.mubr.bf16.mxu0 %v922
        %960 = vmatmul.mubr.bf16.gmra.mrb[0].mxu0 %v921
        %v961 = vpop.f32.mrb[0].mxu0
        %v962 = vadd.f32 0.0, %v961
        %v963 = vpop.f32.mrb[0].mxu0
        %v964 = vpop.f32.mrb[0].mxu0
        %v965 = vadd.f32 0.0, %v964
        %v966 = vpop.f32.mrb[0].mxu0
        %967 = vmatprep.mubr.bf16.mxu0 %v925
        %968 = vmatmul.mubr.bf16.gmra.mrb[0].mxu0 %v924
        %v969 = vpop.f32.mrb[0].mxu0
        %v970 = vadd.f32 0.0, %v969
        %v971 = vpop.f32.mrb[0].mxu0
        %v972 = vpop.f32.mrb[0].mxu0
        %v973 = vpop.f32.mrb[0].mxu0
        %974 = vdwg.mxu0
        %975 = vmatprep.subr.bf16.mxu0 0
        %976 = vmatpush1.bf16.msra.mxu0 %v499
        %977 = vmatprep.subr.bf16.mxu0 0
        %978 = vmatpush1.bf16.msra.mxu0 %v500
        %979 = vmatprep.subr.bf16.mxu0 0
        %980 = vmatpush1.bf16.msra.mxu0 %v501
        %981 = vmatprep.subr.bf16.mxu0 0
        %982 = vmatpush1.bf16.msra.mxu0 %v502
        %983 = vmatprep.subr.bf16.mxu0 0
        %984 = vmatpush1.bf16.msra.mxu0 %v503
        %985 = vmatprep.subr.bf16.mxu0 0
        %986 = vmatpush1.bf16.msra.mxu0 %v504
        %987 = vmatprep.subr.bf16.mxu0 0
        %988 = vmatpush1.bf16.msra.mxu0 %v505
        %989 = vmatprep.subr.bf16.mxu0 0
        %990 = vmatpush1.bf16.msra.mxu0 %v506
        %991 = vmatprep.subr.bf16.mxu0 0
        %992 = vmatpush1.bf16.msra.mxu0 0
        %993 = vmatprep.subr.bf16.mxu0 0
        %994 = vmatpush1.bf16.msra.mxu0 0
        %995 = vmatprep.subr.bf16.mxu0 0
        %996 = vmatpush1.bf16.msra.mxu0 0
        %997 = vmatprep.subr.bf16.mxu0 0
        %998 = vmatpush1.bf16.msra.mxu0 0
        %999 = vmatprep.subr.bf16.mxu0 0
        %1000 = vmatpush1.bf16.msra.mxu0 0
        %1001 = vmatprep.subr.bf16.mxu0 0
        %1002 = vmatpush1.bf16.msra.mxu0 0
        %1003 = vmatprep.subr.bf16.mxu0 0
        %1004 = vmatpush1.bf16.msra.mxu0 0
        %1005 = vmatprep.subr.bf16.mxu0 0
        %1006 = vmatpush1.bf16.msra.mxu0 0
        %1007 = vmatprep.mubr.bf16.mxu0 0
        %1008 = vmatmul.mubr.bf16.gmra.mrb[0].mxu0 %v923
        %v1009 = vpop.f32.mrb[0].mxu0
        %v1010 = vadd.f32 %v962, %v1009
        %v1011 = vpop.f32.mrb[0].mxu0
        %v1012 = vpop.f32.mrb[0].mxu0
        %v1013 = vadd.f32 %v965, %v1012
        %v1014 = vpop.f32.mrb[0].mxu0
        %1015 = vmatprep.mubr.bf16.mxu0 0
        %1016 = vmatmul.mubr.bf16.gmra.mrb[0].mxu0 %v926
        %v1017 = vpop.f32.mrb[0].mxu0
        %v1018 = vadd.f32 %v970, %v1017
        %v1019 = vpop.f32.mrb[0].mxu0
        %v1020 = vpop.f32.mrb[0].mxu0
        %v1021 = vpop.f32.mrb[0].mxu0
        %1022 = vdwg.mxu0
        %v1023 = vpack.c.bf16 %v1013, %v1010
        %v1024 = vpack.c.bf16 %v1018, %v1018
        %v1026 = vsel %vm659, %v1023, 0
        %v1029 = vsel %vm659, %v1024, 0
        %1031 = vmatprep.subr.bf16.mxu0 0
        %1032 = vmatpush1.bf16.msra.mxu0 %v651
        %1033 = vmatprep.subr.bf16.mxu0 0
        %1034 = vmatpush1.bf16.msra.mxu0 %v652
        %1035 = vmatprep.subr.bf16.mxu0 0
        %1036 = vmatpush1.bf16.msra.mxu0 %v653
        %1037 = vmatprep.subr.bf16.mxu0 0
        %1038 = vmatpush1.bf16.msra.mxu0 %v654
        %1039 = vmatprep.subr.bf16.mxu0 0
        %1040 = vmatpush1.bf16.msra.mxu0 0
        %1041 = vmatprep.subr.bf16.mxu0 0
        %1042 = vmatpush1.bf16.msra.mxu0 0
        %1043 = vmatprep.subr.bf16.mxu0 0
        %1044 = vmatpush1.bf16.msra.mxu0 0
        %1045 = vmatprep.subr.bf16.mxu0 0
        %1046 = vmatpush1.bf16.msra.mxu0 0
        %1047 = vmatprep.subr.bf16.mxu0 0
        %1048 = vmatpush1.bf16.msra.mxu0 0
        %1049 = vmatprep.subr.bf16.mxu0 0
        %1050 = vmatpush1.bf16.msra.mxu0 0
        %1051 = vmatprep.subr.bf16.mxu0 0
        %1052 = vmatpush1.bf16.msra.mxu0 0
        %1053 = vmatprep.subr.bf16.mxu0 0
        %1054 = vmatpush1.bf16.msra.mxu0 0
        %1055 = vmatprep.subr.bf16.mxu0 0
        %1056 = vmatpush1.bf16.msra.mxu0 0
        %1057 = vmatprep.subr.bf16.mxu0 0
        %1058 = vmatpush1.bf16.msra.mxu0 0
        %1059 = vmatprep.subr.bf16.mxu0 0
        %1060 = vmatpush1.bf16.msra.mxu0 0
        %1061 = vmatprep.subr.bf16.mxu0 0
        %1062 = vmatpush1.bf16.msra.mxu0 0
        %1063 = vmatprep.mubr.bf16.mxu0 0
        %1064 = vmatmul.mubr.bf16.gmra.mrb[0].mxu0 %v1026
        %v1065 = vpop.f32.mrb[0].mxu0
        %v1066 = vadd.f32 %v633, %v1065
        %v1067 = vpop.f32.mrb[0].mxu0
        %v1068 = vpop.f32.mrb[0].mxu0
        %v1069 = vadd.f32 %v633, %v1068
        %v1070 = vpop.f32.mrb[0].mxu0
        %1071 = vmatprep.mubr.bf16.mxu0 0
        %1072 = vmatmul.mubr.bf16.gmra.mrb[0].mxu0 %v1029
        %v1073 = vpop.f32.mrb[0].mxu0
        %v1074 = vadd.f32 %v633, %v1073
        %v1075 = vpop.f32.mrb[0].mxu0
        %v1076 = vpop.f32.mrb[0].mxu0
        %v1077 = vpop.f32.mrb[0].mxu0
        %1078 = vdwg.mxu0
        %v1079 = vmax.f32 %v1066, 0.0
        %v1080 = vmax.f32 %v1069, 0.0
        %v1081 = vmax.f32 %v1074, 0.0
        %v1082 = vpack.c.bf16 %v1080, %v1079
        %v1083 = vpack.c.bf16 %v1081, %v1081
        %v1084 = vld [vmem:[%s4 + $0x20] sm:$0xf]
        %v1085 = vld [vmem:[%s4 + $0x24] sm:$0xf]
        %v1086 = vld [vmem:[%s4 + $0x28] sm:$0xf]
        %v1087 = vld [vmem:[%s4 + $0x2c] sm:$0xf]
        %v1088 = vld [vmem:[%s4 + $0x30] sm:$0xf]
        %v1089 = vld [vmem:[%s4 + $0x34] sm:$0xf]
        %v1090 = vld [vmem:[%s4 + $0x38] sm:$0xf]
        %v1091 = vld [vmem:[%s4 + $0x3c] sm:$0xf]
        %v1100 = vunpack.c.l.b16 %v1084
        %v1101 = vunpack.c.l.b16 %v1085
        %v1102 = vunpack.c.l.b16 %v1086
        %v1103 = vunpack.c.l.b16 %v1087
        %v1104 = vunpack.c.l.b16 %v1088
        %v1105 = vunpack.c.l.b16 %v1089
        %v1106 = vunpack.c.l.b16 %v1090
        %v1107 = vunpack.c.l.b16 %v1091
        %v1108 = vpack.c.b16 %v1101, %v1100
        %v1109 = vpack.c.b16 %v1103, %v1102
        %v1110 = vpack.c.b16 %v1105, %v1104
        %v1111 = vpack.c.b16 %v1107, %v1106
        %v1117 = vsel %vm659, %v1082, 0
        %v1120 = vsel %vm659, %v1083, 0
        %1122 = vmatprep.subr.bf16.mxu0 0
        %1123 = vmatpush1.bf16.msra.mxu0 %v1108
        %1124 = vmatprep.subr.bf16.mxu0 0
        %1125 = vmatpush1.bf16.msra.mxu0 %v1109
        %1126 = vmatprep.subr.bf16.mxu0 0
        %1127 = vmatpush1.bf16.msra.mxu0 %v1110
        %1128 = vmatprep.subr.bf16.mxu0 0
        %1129 = vmatpush1.bf16.msra.mxu0 %v1111
        %1130 = vmatprep.subr.bf16.mxu0 0
        %1131 = vmatpush1.bf16.msra.mxu0 0
        %1132 = vmatprep.subr.bf16.mxu0 0
        %1133 = vmatpush1.bf16.msra.mxu0 0
        %1134 = vmatprep.subr.bf16.mxu0 0
        %1135 = vmatpush1.bf16.msra.mxu0 0
        %1136 = vmatprep.subr.bf16.mxu0 0
        %1137 = vmatpush1.bf16.msra.mxu0 0
        %1138 = vmatprep.subr.bf16.mxu0 0
        %1139 = vmatpush1.bf16.msra.mxu0 0
        %1140 = vmatprep.subr.bf16.mxu0 0
        %1141 = vmatpush1.bf16.msra.mxu0 0
        %1142 = vmatprep.subr.bf16.mxu0 0
        %1143 = vmatpush1.bf16.msra.mxu0 0
        %1144 = vmatprep.subr.bf16.mxu0 0
        %1145 = vmatpush1.bf16.msra.mxu0 0
        %1146 = vmatprep.subr.bf16.mxu0 0
        %1147 = vmatpush1.bf16.msra.mxu0 0
        %1148 = vmatprep.subr.bf16.mxu0 0
        %1149 = vmatpush1.bf16.msra.mxu0 0
        %1150 = vmatprep.subr.bf16.mxu0 0
        %1151 = vmatpush1.bf16.msra.mxu0 0
        %1152 = vmatprep.subr.bf16.mxu0 0
        %1153 = vmatpush1.bf16.msra.mxu0 0
        %1154 = vmatprep.mubr.bf16.mxu0 0
        %1155 = vmatmul.mubr.bf16.gmra.mrb[0].mxu0 %v1117
        %v1156 = vpop.f32.mrb[0].mxu0
        %v1157 = vadd.f32 0.0, %v1156
        %v1158 = vpop.f32.mrb[0].mxu0
        %v1159 = vpop.f32.mrb[0].mxu0
        %v1160 = vadd.f32 0.0, %v1159
        %v1161 = vpop.f32.mrb[0].mxu0
        %1162 = vmatprep.mubr.bf16.mxu0 0
        %1163 = vmatmul.mubr.bf16.gmra.mrb[0].mxu0 %v1120
        %v1164 = vpop.f32.mrb[0].mxu0
        %v1165 = vadd.f32 0.0, %v1164
        %v1166 = vpop.f32.mrb[0].mxu0
        %v1167 = vpop.f32.mrb[0].mxu0
        %v1168 = vpop.f32.mrb[0].mxu0
        %1169 = vdwg.mxu0
        %v1170 = vadd.f32 %v872, %v1157
        %v1171 = vadd.f32 %v875, %v1160
        %v1172 = vadd.f32 %v880, %v1165
        %v1173 = vld [vmem:[%s5 + $0x20] sm:$0xf]
        %v1174 = vld [vmem:[%s5 + $0x24] sm:$0xf]
        %v1175 = vld [vmem:[%s5 + $0x28] sm:$0xf]
        %v1176 = vld [vmem:[%s5 + $0x2c] sm:$0xf]
        %v1177 = vld [vmem:[%s5 + $0x30] sm:$0xf]
        %v1178 = vld [vmem:[%s5 + $0x34] sm:$0xf]
        %v1179 = vld [vmem:[%s5 + $0x38] sm:$0xf]
        %v1180 = vld [vmem:[%s5 + $0x3c] sm:$0xf]
        %v1189 = vunpack.c.l.b16 %v1173
        %v1190 = vunpack.c.l.b16 %v1174
        %v1191 = vunpack.c.l.b16 %v1175
        %v1192 = vunpack.c.l.b16 %v1176
        %v1193 = vunpack.c.l.b16 %v1177
        %v1194 = vunpack.c.l.b16 %v1178
        %v1195 = vunpack.c.l.b16 %v1179
        %v1196 = vunpack.c.l.b16 %v1180
        %v1197 = vpack.c.b16 %v1190, %v1189
        %v1198 = vpack.c.b16 %v1192, %v1191
        %v1199 = vpack.c.b16 %v1194, %v1193
        %v1200 = vpack.c.b16 %v1196, %v1195
        %1205 = vmatprep.subr.bf16.mxu0 0
        %1206 = vmatpush1.bf16.msra.mxu0 %v1197
        %1207 = vmatprep.subr.bf16.mxu0 0
        %1208 = vmatpush1.bf16.msra.mxu0 %v1198
        %1209 = vmatprep.subr.bf16.mxu0 0
        %1210 = vmatpush1.bf16.msra.mxu0 %v1199
        %1211 = vmatprep.subr.bf16.mxu0 0
        %1212 = vmatpush1.bf16.msra.mxu0 %v1200
        %1213 = vmatprep.subr.bf16.mxu0 0
        %1214 = vmatpush1.bf16.msra.mxu0 0
        %1215 = vmatprep.subr.bf16.mxu0 0
        %1216 = vmatpush1.bf16.msra.mxu0 0
        %1217 = vmatprep.subr.bf16.mxu0 0
        %1218 = vmatpush1.bf16.msra.mxu0 0
        %1219 = vmatprep.subr.bf16.mxu0 0
        %1220 = vmatpush1.bf16.msra.mxu0 0
        %1221 = vmatprep.subr.bf16.mxu0 0
        %1222 = vmatpush1.bf16.msra.mxu0 0
        %1223 = vmatprep.subr.bf16.mxu0 0
        %1224 = vmatpush1.bf16.msra.mxu0 0
        %1225 = vmatprep.subr.bf16.mxu0 0
        %1226 = vmatpush1.bf16.msra.mxu0 0
        %1227 = vmatprep.subr.bf16.mxu0 0
        %1228 = vmatpush1.bf16.msra.mxu0 0
        %1229 = vmatprep.subr.bf16.mxu0 0
        %1230 = vmatpush1.bf16.msra.mxu0 0
        %1231 = vmatprep.subr.bf16.mxu0 0
        %1232 = vmatpush1.bf16.msra.mxu0 0
        %1233 = vmatprep.subr.bf16.mxu0 0
        %1234 = vmatpush1.bf16.msra.mxu0 0
        %1235 = vmatprep.subr.bf16.mxu0 0
        %1236 = vmatpush1.bf16.msra.mxu0 0
        %1237 = vmatprep.mubr.bf16.mxu0 0
        %1238 = vmatmul.mubr.bf16.gmra.mrb[0].mxu0 %v1026
        %v1239 = vpop.f32.mrb[0].mxu0
        %v1240 = vadd.f32 0.0, %v1239
        %v1241 = vpop.f32.mrb[0].mxu0
        %v1242 = vpop.f32.mrb[0].mxu0
        %v1243 = vadd.f32 0.0, %v1242
        %v1244 = vpop.f32.mrb[0].mxu0
        %1245 = vmatprep.mubr.bf16.mxu0 0
        %1246 = vmatmul.mubr.bf16.gmra.mrb[0].mxu0 %v1029
        %v1247 = vpop.f32.mrb[0].mxu0
        %v1248 = vadd.f32 0.0, %v1247
        %v1249 = vpop.f32.mrb[0].mxu0
        %v1250 = vpop.f32.mrb[0].mxu0
        %v1251 = vpop.f32.mrb[0].mxu0
        %1252 = vdwg.mxu0
        %v1253 = vadd.f32 %v1170, %v1240
        %v1254 = vadd.f32 %v1171, %v1243
        %v1255 = vadd.f32 %v1172, %v1248
        %1256 = vset.pattern.permute.xlu0 2
        %1257 = vperm.xlu0 %1256, %v281
        %v1258 = vpop.permute.xlu0 %1257
        %1259 = vset.pattern.permute.xlu0 2
        %1260 = vperm.xlu0 %1259, %v282
        %v1261 = vpop.permute.xlu0 %1260
        %1262 = vset.pattern.permute.xlu0 2
        %1263 = vperm.xlu0 %1262, %v283
        %v1264 = vpop.permute.xlu0 %1263
        %vm1265 = vcmp.eq.s32.totalorder %v342, %v1258
        %vm1266 = vcmp.eq.s32.totalorder %v343, %v1258
        %vm1267 = vcmp.eq.s32.totalorder %v344, %v1258
        %vm1268 = vcmp.eq.s32.totalorder %v342, %v1261
        %vm1269 = vcmp.eq.s32.totalorder %v343, %v1261
        %vm1270 = vcmp.eq.s32.totalorder %v344, %v1261
        %vm1271 = vcmp.eq.s32.totalorder %v342, %v1264
        %vm1272 = vcmp.eq.s32.totalorder %v343, %v1264
        %vm1273 = vcmp.eq.s32.totalorder %v344, %v1264
        %v1274 = vsel %vm1265, 1, 0
        %v1275 = vsel %vm1266, 1, 0
        %v1276 = vsel %vm1267, 1, 0
        %v1277 = vsel %vm1268, 1, 0
        %v1278 = vsel %vm1269, 1, 0
        %v1279 = vsel %vm1270, 1, 0
        %v1280 = vsel %vm1271, 1, 0
        %v1281 = vsel %vm1272, 1, 0
        %v1282 = vsel %vm1273, 1, 0
        %v1283 = vcvt.s32.f32 %v1274
        %v1284 = vcvt.s32.f32 %v1275
        %v1285 = vcvt.s32.f32 %v1276
        %v1286 = vcvt.s32.f32 %v1277
        %v1287 = vcvt.s32.f32 %v1278
        %v1288 = vcvt.s32.f32 %v1279
        %v1289 = vcvt.s32.f32 %v1280
        %v1290 = vcvt.s32.f32 %v1281
        %v1291 = vcvt.s32.f32 %v1282
        %v1292 = vpack.c.bf16 %v1286, %v1283
        %v1293 = vpack.c.bf16 %v1287, %v1284
        %v1294 = vpack.c.bf16 %v1288, %v1285
        %v1295 = vpack.c.bf16 %v1289, %v1289
        %v1296 = vpack.c.bf16 %v1290, %v1290
        %v1297 = vpack.c.bf16 %v1291, %v1291
        %1298 = vmatprep.subr.bf16.mxu0 0
        %1299 = vmatpush1.bf16.msra.mxu0 %v483
        %1300 = vmatprep.subr.bf16.mxu0 0
        %1301 = vmatpush1.bf16.msra.mxu0 %v484
        %1302 = vmatprep.subr.bf16.mxu0 0
        %1303 = vmatpush1.bf16.msra.mxu0 %v485
        %1304 = vmatprep.subr.bf16.mxu0 0
        %1305 = vmatpush1.bf16.msra.mxu0 %v486
        %1306 = vmatprep.subr.bf16.mxu0 0
        %1307 = vmatpush1.bf16.msra.mxu0 %v487
        %1308 = vmatprep.subr.bf16.mxu0 0
        %1309 = vmatpush1.bf16.msra.mxu0 %v488
        %1310 = vmatprep.subr.bf16.mxu0 0
        %1311 = vmatpush1.bf16.msra.mxu0 %v489
        %1312 = vmatprep.subr.bf16.mxu0 0
        %1313 = vmatpush1.bf16.msra.mxu0 %v490
        %1314 = vmatprep.subr.bf16.mxu0 0
        %1315 = vmatpush1.bf16.msra.mxu0 %v491
        %1316 = vmatprep.subr.bf16.mxu0 0
        %1317 = vmatpush1.bf16.msra.mxu0 %v492
        %1318 = vmatprep.subr.bf16.mxu0 0
        %1319 = vmatpush1.bf16.msra.mxu0 %v493
        %1320 = vmatprep.subr.bf16.mxu0 0
        %1321 = vmatpush1.bf16.msra.mxu0 %v494
        %1322 = vmatprep.subr.bf16.mxu0 0
        %1323 = vmatpush1.bf16.msra.mxu0 %v495
        %1324 = vmatprep.subr.bf16.mxu0 0
        %1325 = vmatpush1.bf16.msra.mxu0 %v496
        %1326 = vmatprep.subr.bf16.mxu0 0
        %1327 = vmatpush1.bf16.msra.mxu0 %v497
        %1328 = vmatprep.subr.bf16.mxu0 0
        %1329 = vmatpush1.bf16.msra.mxu0 %v498
        %1330 = vmatprep.mubr.bf16.mxu0 %v1293
        %1331 = vmatmul.mubr.bf16.gmra.mrb[0].mxu0 %v1292
        %v1332 = vpop.f32.mrb[0].mxu0
        %v1333 = vadd.f32 0.0, %v1332
        %v1334 = vpop.f32.mrb[0].mxu0
        %v1335 = vpop.f32.mrb[0].mxu0
        %v1336 = vadd.f32 0.0, %v1335
        %v1337 = vpop.f32.mrb[0].mxu0
        %1338 = vmatprep.mubr.bf16.mxu0 %v1296
        %1339 = vmatmul.mubr.bf16.gmra.mrb[0].mxu0 %v1295
        %v1340 = vpop.f32.mrb[0].mxu0
        %v1341 = vadd.f32 0.0, %v1340
        %v1342 = vpop.f32.mrb[0].mxu0
        %v1343 = vpop.f32.mrb[0].mxu0
        %v1344 = vpop.f32.mrb[0].mxu0
        %1345 = vdwg.mxu0
        %1346 = vmatprep.subr.bf16.mxu0 0
        %1347 = vmatpush1.bf16.msra.mxu0 %v499
        %1348 = vmatprep.subr.bf16.mxu0 0
        %1349 = vmatpush1.bf16.msra.mxu0 %v500
        %1350 = vmatprep.subr.bf16.mxu0 0
        %1351 = vmatpush1.bf16.msra.mxu0 %v501
        %1352 = vmatprep.subr.bf16.mxu0 0
        %1353 = vmatpush1.bf16.msra.mxu0 %v502
        %1354 = vmatprep.subr.bf16.mxu0 0
        %1355 = vmatpush1.bf16.msra.mxu0 %v503
        %1356 = vmatprep.subr.bf16.mxu0 0
        %1357 = vmatpush1.bf16.msra.mxu0 %v504
        %1358 = vmatprep.subr.bf16.mxu0 0
        %1359 = vmatpush1.bf16.msra.mxu0 %v505
        %1360 = vmatprep.subr.bf16.mxu0 0
        %1361 = vmatpush1.bf16.msra.mxu0 %v506
        %1362 = vmatprep.subr.bf16.mxu0 0
        %1363 = vmatpush1.bf16.msra.mxu0 0
        %1364 = vmatprep.subr.bf16.mxu0 0
        %1365 = vmatpush1.bf16.msra.mxu0 0
        %1366 = vmatprep.subr.bf16.mxu0 0
        %1367 = vmatpush1.bf16.msra.mxu0 0
        %1368 = vmatprep.subr.bf16.mxu0 0
        %1369 = vmatpush1.bf16.msra.mxu0 0
        %1370 = vmatprep.subr.bf16.mxu0 0
        %1371 = vmatpush1.bf16.msra.mxu0 0
        %1372 = vmatprep.subr.bf16.mxu0 0
        %1373 = vmatpush1.bf16.msra.mxu0 0
        %1374 = vmatprep.subr.bf16.mxu0 0
        %1375 = vmatpush1.bf16.msra.mxu0 0
        %1376 = vmatprep.subr.bf16.mxu0 0
        %1377 = vmatpush1.bf16.msra.mxu0 0
        %1378 = vmatprep.mubr.bf16.mxu0 0
        %1379 = vmatmul.mubr.bf16.gmra.mrb[0].mxu0 %v1294
        %v1380 = vpop.f32.mrb[0].mxu0
        %v1381 = vadd.f32 %v1333, %v1380
        %v1382 = vpop.f32.mrb[0].mxu0
        %v1383 = vpop.f32.mrb[0].mxu0
        %v1384 = vadd.f32 %v1336, %v1383
        %v1385 = vpop.f32.mrb[0].mxu0
        %1386 = vmatprep.mubr.bf16.mxu0 0
        %1387 = vmatmul.mubr.bf16.gmra.mrb[0].mxu0 %v1297
        %v1388 = vpop.f32.mrb[0].mxu0
        %v1389 = vadd.f32 %v1341, %v1388
        %v1390 = vpop.f32.mrb[0].mxu0
        %v1391 = vpop.f32.mrb[0].mxu0
        %v1392 = vpop.f32.mrb[0].mxu0
        %1393 = vdwg.mxu0
        %v1394 = vpack.c.bf16 %v1384, %v1381
        %v1395 = vpack.c.bf16 %v1389, %v1389
        %v1397 = vsel %vm659, %v1394, 0
        %v1400 = vsel %vm659, %v1395, 0
        %1402 = vmatprep.subr.bf16.mxu0 0
        %1403 = vmatpush1.bf16.msra.mxu0 %v651
        %1404 = vmatprep.subr.bf16.mxu0 0
        %1405 = vmatpush1.bf16.msra.mxu0 %v652
        %1406 = vmatprep.subr.bf16.mxu0 0
        %1407 = vmatpush1.bf16.msra.mxu0 %v653
        %1408 = vmatprep.subr.bf16.mxu0 0
        %1409 = vmatpush1.bf16.msra.mxu0 %v654
        %1410 = vmatprep.subr.bf16.mxu0 0
        %1411 = vmatpush1.bf16.msra.mxu0 0
        %1412 = vmatprep.subr.bf16.mxu0 0
        %1413 = vmatpush1.bf16.msra.mxu0 0
        %1414 = vmatprep.subr.bf16.mxu0 0
        %1415 = vmatpush1.bf16.msra.mxu0 0
        %1416 = vmatprep.subr.bf16.mxu0 0
        %1417 = vmatpush1.bf16.msra.mxu0 0
        %1418 = vmatprep.subr.bf16.mxu0 0
        %1419 = vmatpush1.bf16.msra.mxu0 0
        %1420 = vmatprep.subr.bf16.mxu0 0
        %1421 = vmatpush1.bf16.msra.mxu0 0
        %1422 = vmatprep.subr.bf16.mxu0 0
        %1423 = vmatpush1.bf16.msra.mxu0 0
        %1424 = vmatprep.subr.bf16.mxu0 0
        %1425 = vmatpush1.bf16.msra.mxu0 0
        %1426 = vmatprep.subr.bf16.mxu0 0
        %1427 = vmatpush1.bf16.msra.mxu0 0
        %1428 = vmatprep.subr.bf16.mxu0 0
        %1429 = vmatpush1.bf16.msra.mxu0 0
        %1430 = vmatprep.subr.bf16.mxu0 0
        %1431 = vmatpush1.bf16.msra.mxu0 0
        %1432 = vmatprep.subr.bf16.mxu0 0
        %1433 = vmatpush1.bf16.msra.mxu0 0
        %1434 = vmatprep.mubr.bf16.mxu0 0
        %1435 = vmatmul.mubr.bf16.gmra.mrb[0].mxu0 %v1397
        %v1436 = vpop.f32.mrb[0].mxu0
        %v1437 = vadd.f32 %v633, %v1436
        %v1438 = vpop.f32.mrb[0].mxu0
        %v1439 = vpop.f32.mrb[0].mxu0
        %v1440 = vadd.f32 %v633, %v1439
        %v1441 = vpop.f32.mrb[0].mxu0
        %1442 = vmatprep.mubr.bf16.mxu0 0
        %1443 = vmatmul.mubr.bf16.gmra.mrb[0].mxu0 %v1400
        %v1444 = vpop.f32.mrb[0].mxu0
        %v1445 = vadd.f32 %v633, %v1444
        %v1446 = vpop.f32.mrb[0].mxu0
        %v1447 = vpop.f32.mrb[0].mxu0
        %v1448 = vpop.f32.mrb[0].mxu0
        %1449 = vdwg.mxu0
        %v1450 = vmax.f32 %v1437, 0.0
        %v1451 = vmax.f32 %v1440, 0.0
        %v1452 = vmax.f32 %v1445, 0.0
        %v1453 = vpack.c.bf16 %v1451, %v1450
        %v1454 = vpack.c.bf16 %v1452, %v1452
        %v1455 = vld [vmem:[%s4 + $0x40] sm:$0xf]
        %v1456 = vld [vmem:[%s4 + $0x44] sm:$0xf]
        %v1457 = vld [vmem:[%s4 + $0x48] sm:$0xf]
        %v1458 = vld [vmem:[%s4 + $0x4c] sm:$0xf]
        %v1459 = vld [vmem:[%s4 + $0x50] sm:$0xf]
        %v1460 = vld [vmem:[%s4 + $0x54] sm:$0xf]
        %v1461 = vld [vmem:[%s4 + $0x58] sm:$0xf]
        %v1462 = vld [vmem:[%s4 + $0x5c] sm:$0xf]
        %v1471 = vunpack.c.l.b16 %v1455
        %v1472 = vunpack.c.l.b16 %v1456
        %v1473 = vunpack.c.l.b16 %v1457
        %v1474 = vunpack.c.l.b16 %v1458
        %v1475 = vunpack.c.l.b16 %v1459
        %v1476 = vunpack.c.l.b16 %v1460
        %v1477 = vunpack.c.l.b16 %v1461
        %v1478 = vunpack.c.l.b16 %v1462
        %v1479 = vpack.c.b16 %v1472, %v1471
        %v1480 = vpack.c.b16 %v1474, %v1473
        %v1481 = vpack.c.b16 %v1476, %v1475
        %v1482 = vpack.c.b16 %v1478, %v1477
        %v1488 = vsel %vm659, %v1453, 0
        %v1491 = vsel %vm659, %v1454, 0
        %1493 = vmatprep.subr.bf16.mxu0 0
        %1494 = vmatpush1.bf16.msra.mxu0 %v1479
        %1495 = vmatprep.subr.bf16.mxu0 0
        %1496 = vmatpush1.bf16.msra.mxu0 %v1480
        %1497 = vmatprep.subr.bf16.mxu0 0
        %1498 = vmatpush1.bf16.msra.mxu0 %v1481
        %1499 = vmatprep.subr.bf16.mxu0 0
        %1500 = vmatpush1.bf16.msra.mxu0 %v1482
        %1501 = vmatprep.subr.bf16.mxu0 0
        %1502 = vmatpush1.bf16.msra.mxu0 0
        %1503 = vmatprep.subr.bf16.mxu0 0
        %1504 = vmatpush1.bf16.msra.mxu0 0
        %1505 = vmatprep.subr.bf16.mxu0 0
        %1506 = vmatpush1.bf16.msra.mxu0 0
        %1507 = vmatprep.subr.bf16.mxu0 0
        %1508 = vmatpush1.bf16.msra.mxu0 0
        %1509 = vmatprep.subr.bf16.mxu0 0
        %1510 = vmatpush1.bf16.msra.mxu0 0
        %1511 = vmatprep.subr.bf16.mxu0 0
        %1512 = vmatpush1.bf16.msra.mxu0 0
        %1513 = vmatprep.subr.bf16.mxu0 0
        %1514 = vmatpush1.bf16.msra.mxu0 0
        %1515 = vmatprep.subr.bf16.mxu0 0
        %1516 = vmatpush1.bf16.msra.mxu0 0
        %1517 = vmatprep.subr.bf16.mxu0 0
        %1518 = vmatpush1.bf16.msra.mxu0 0
        %1519 = vmatprep.subr.bf16.mxu0 0
        %1520 = vmatpush1.bf16.msra.mxu0 0
        %1521 = vmatprep.subr.bf16.mxu0 0
        %1522 = vmatpush1.bf16.msra.mxu0 0
        %1523 = vmatprep.subr.bf16.mxu0 0
        %1524 = vmatpush1.bf16.msra.mxu0 0
        %1525 = vmatprep.mubr.bf16.mxu0 0
        %1526 = vmatmul.mubr.bf16.gmra.mrb[0].mxu0 %v1488
        %v1527 = vpop.f32.mrb[0].mxu0
        %v1528 = vadd.f32 0.0, %v1527
        %v1529 = vpop.f32.mrb[0].mxu0
        %v1530 = vpop.f32.mrb[0].mxu0
        %v1531 = vadd.f32 0.0, %v1530
        %v1532 = vpop.f32.mrb[0].mxu0
        %1533 = vmatprep.mubr.bf16.mxu0 0
        %1534 = vmatmul.mubr.bf16.gmra.mrb[0].mxu0 %v1491
        %v1535 = vpop.f32.mrb[0].mxu0
        %v1536 = vadd.f32 0.0, %v1535
        %v1537 = vpop.f32.mrb[0].mxu0
        %v1538 = vpop.f32.mrb[0].mxu0
        %v1539 = vpop.f32.mrb[0].mxu0
        %1540 = vdwg.mxu0
        %v1541 = vadd.f32 %v1253, %v1528
        %v1542 = vadd.f32 %v1254, %v1531
        %v1543 = vadd.f32 %v1255, %v1536
        %v1544 = vld [vmem:[%s5 + $0x40] sm:$0xf]
        %v1545 = vld [vmem:[%s5 + $0x44] sm:$0xf]
        %v1546 = vld [vmem:[%s5 + $0x48] sm:$0xf]
        %v1547 = vld [vmem:[%s5 + $0x4c] sm:$0xf]
        %v1548 = vld [vmem:[%s5 + $0x50] sm:$0xf]
        %v1549 = vld [vmem:[%s5 + $0x54] sm:$0xf]
        %v1550 = vld [vmem:[%s5 + $0x58] sm:$0xf]
        %v1551 = vld [vmem:[%s5 + $0x5c] sm:$0xf]
        %v1560 = vunpack.c.l.b16 %v1544
        %v1561 = vunpack.c.l.b16 %v1545
        %v1562 = vunpack.c.l.b16 %v1546
        %v1563 = vunpack.c.l.b16 %v1547
        %v1564 = vunpack.c.l.b16 %v1548
        %v1565 = vunpack.c.l.b16 %v1549
        %v1566 = vunpack.c.l.b16 %v1550
        %v1567 = vunpack.c.l.b16 %v1551
        %v1568 = vpack.c.b16 %v1561, %v1560
        %v1569 = vpack.c.b16 %v1563, %v1562
        %v1570 = vpack.c.b16 %v1565, %v1564
        %v1571 = vpack.c.b16 %v1567, %v1566
        %1576 = vmatprep.subr.bf16.mxu0 0
        %1577 = vmatpush1.bf16.msra.mxu0 %v1568
        %1578 = vmatprep.subr.bf16.mxu0 0
        %1579 = vmatpush1.bf16.msra.mxu0 %v1569
        %1580 = vmatprep.subr.bf16.mxu0 0
        %1581 = vmatpush1.bf16.msra.mxu0 %v1570
        %1582 = vmatprep.subr.bf16.mxu0 0
        %1583 = vmatpush1.bf16.msra.mxu0 %v1571
        %1584 = vmatprep.subr.bf16.mxu0 0
        %1585 = vmatpush1.bf16.msra.mxu0 0
        %1586 = vmatprep.subr.bf16.mxu0 0
        %1587 = vmatpush1.bf16.msra.mxu0 0
        %1588 = vmatprep.subr.bf16.mxu0 0
        %1589 = vmatpush1.bf16.msra.mxu0 0
        %1590 = vmatprep.subr.bf16.mxu0 0
        %1591 = vmatpush1.bf16.msra.mxu0 0
        %1592 = vmatprep.subr.bf16.mxu0 0
        %1593 = vmatpush1.bf16.msra.mxu0 0
        %1594 = vmatprep.subr.bf16.mxu0 0
        %1595 = vmatpush1.bf16.msra.mxu0 0
        %1596 = vmatprep.subr.bf16.mxu0 0
        %1597 = vmatpush1.bf16.msra.mxu0 0
        %1598 = vmatprep.subr.bf16.mxu0 0
        %1599 = vmatpush1.bf16.msra.mxu0 0
        %1600 = vmatprep.subr.bf16.mxu0 0
        %1601 = vmatpush1.bf16.msra.mxu0 0
        %1602 = vmatprep.subr.bf16.mxu0 0
        %1603 = vmatpush1.bf16.msra.mxu0 0
        %1604 = vmatprep.subr.bf16.mxu0 0
        %1605 = vmatpush1.bf16.msra.mxu0 0
        %1606 = vmatprep.subr.bf16.mxu0 0
        %1607 = vmatpush1.bf16.msra.mxu0 0
        %1608 = vmatprep.mubr.bf16.mxu0 0
        %1609 = vmatmul.mubr.bf16.gmra.mrb[0].mxu0 %v1397
        %v1610 = vpop.f32.mrb[0].mxu0
        %v1611 = vadd.f32 0.0, %v1610
        %v1612 = vpop.f32.mrb[0].mxu0
        %v1613 = vpop.f32.mrb[0].mxu0
        %v1614 = vadd.f32 0.0, %v1613
        %v1615 = vpop.f32.mrb[0].mxu0
        %1616 = vmatprep.mubr.bf16.mxu0 0
        %1617 = vmatmul.mubr.bf16.gmra.mrb[0].mxu0 %v1400
        %v1618 = vpop.f32.mrb[0].mxu0
        %v1619 = vadd.f32 0.0, %v1618
        %v1620 = vpop.f32.mrb[0].mxu0
        %v1621 = vpop.f32.mrb[0].mxu0
        %v1622 = vpop.f32.mrb[0].mxu0
        %1623 = vdwg.mxu0
        %v1624 = vadd.f32 %v1541, %v1611
        %v1625 = vadd.f32 %v1542, %v1614
        %v1626 = vadd.f32 %v1543, %v1619
        %1627 = vset.pattern.permute.xlu0 3
        %1628 = vperm.xlu0 %1627, %v281
        %v1629 = vpop.permute.xlu0 %1628
        %1630 = vset.pattern.permute.xlu0 3
        %1631 = vperm.xlu0 %1630, %v282
        %v1632 = vpop.permute.xlu0 %1631
        %1633 = vset.pattern.permute.xlu0 3
        %1634 = vperm.xlu0 %1633, %v283
        %v1635 = vpop.permute.xlu0 %1634
        %vm1636 = vcmp.eq.s32.totalorder %v342, %v1629
        %vm1637 = vcmp.eq.s32.totalorder %v343, %v1629
        %vm1638 = vcmp.eq.s32.totalorder %v344, %v1629
        %vm1639 = vcmp.eq.s32.totalorder %v342, %v1632
        %vm1640 = vcmp.eq.s32.totalorder %v343, %v1632
        %vm1641 = vcmp.eq.s32.totalorder %v344, %v1632
        %vm1642 = vcmp.eq.s32.totalorder %v342, %v1635
        %vm1643 = vcmp.eq.s32.totalorder %v343, %v1635
        %vm1644 = vcmp.eq.s32.totalorder %v344, %v1635
        %v1645 = vsel %vm1636, 1, 0
        %v1646 = vsel %vm1637, 1, 0
        %v1647 = vsel %vm1638, 1, 0
        %v1648 = vsel %vm1639, 1, 0
        %v1649 = vsel %vm1640, 1, 0
        %v1650 = vsel %vm1641, 1, 0
        %v1651 = vsel %vm1642, 1, 0
        %v1652 = vsel %vm1643, 1, 0
        %v1653 = vsel %vm1644, 1, 0
        %v1654 = vcvt.s32.f32 %v1645
        %v1655 = vcvt.s32.f32 %v1646
        %v1656 = vcvt.s32.f32 %v1647
        %v1657 = vcvt.s32.f32 %v1648
        %v1658 = vcvt.s32.f32 %v1649
        %v1659 = vcvt.s32.f32 %v1650
        %v1660 = vcvt.s32.f32 %v1651
        %v1661 = vcvt.s32.f32 %v1652
        %v1662 = vcvt.s32.f32 %v1653
        %v1663 = vpack.c.bf16 %v1657, %v1654
        %v1664 = vpack.c.bf16 %v1658, %v1655
        %v1665 = vpack.c.bf16 %v1659, %v1656
        %v1666 = vpack.c.bf16 %v1660, %v1660
        %v1667 = vpack.c.bf16 %v1661, %v1661
        %v1668 = vpack.c.bf16 %v1662, %v1662
        %1669 = vmatprep.subr.bf16.mxu0 0
        %1670 = vmatpush1.bf16.msra.mxu0 %v483
        %1671 = vmatprep.subr.bf16.mxu0 0
        %1672 = vmatpush1.bf16.msra.mxu0 %v484
        %1673 = vmatprep.subr.bf16.mxu0 0
        %1674 = vmatpush1.bf16.msra.mxu0 %v485
        %1675 = vmatprep.subr.bf16.mxu0 0
        %1676 = vmatpush1.bf16.msra.mxu0 %v486
        %1677 = vmatprep.subr.bf16.mxu0 0
        %1678 = vmatpush1.bf16.msra.mxu0 %v487
        %1679 = vmatprep.subr.bf16.mxu0 0
        %1680 = vmatpush1.bf16.msra.mxu0 %v488
        %1681 = vmatprep.subr.bf16.mxu0 0
        %1682 = vmatpush1.bf16.msra.mxu0 %v489
        %1683 = vmatprep.subr.bf16.mxu0 0
        %1684 = vmatpush1.bf16.msra.mxu0 %v490
        %1685 = vmatprep.subr.bf16.mxu0 0
        %1686 = vmatpush1.bf16.msra.mxu0 %v491
        %1687 = vmatprep.subr.bf16.mxu0 0
        %1688 = vmatpush1.bf16.msra.mxu0 %v492
        %1689 = vmatprep.subr.bf16.mxu0 0
        %1690 = vmatpush1.bf16.msra.mxu0 %v493
        %1691 = vmatprep.subr.bf16.mxu0 0
        %1692 = vmatpush1.bf16.msra.mxu0 %v494
        %1693 = vmatprep.subr.bf16.mxu0 0
        %1694 = vmatpush1.bf16.msra.mxu0 %v495
        %1695 = vmatprep.subr.bf16.mxu0 0
        %1696 = vmatpush1.bf16.msra.mxu0 %v496
        %1697 = vmatprep.subr.bf16.mxu0 0
        %1698 = vmatpush1.bf16.msra.mxu0 %v497
        %1699 = vmatprep.subr.bf16.mxu0 0
        %1700 = vmatpush1.bf16.msra.mxu0 %v498
        %1701 = vmatprep.mubr.bf16.mxu0 %v1664
        %1702 = vmatmul.mubr.bf16.gmra.mrb[0].mxu0 %v1663
        %v1703 = vpop.f32.mrb[0].mxu0
        %v1704 = vadd.f32 0.0, %v1703
        %v1705 = vpop.f32.mrb[0].mxu0
        %v1706 = vpop.f32.mrb[0].mxu0
        %v1707 = vadd.f32 0.0, %v1706
        %v1708 = vpop.f32.mrb[0].mxu0
        %1709 = vmatprep.mubr.bf16.mxu0 %v1667
        %1710 = vmatmul.mubr.bf16.gmra.mrb[0].mxu0 %v1666
        %v1711 = vpop.f32.mrb[0].mxu0
        %v1712 = vadd.f32 0.0, %v1711
        %v1713 = vpop.f32.mrb[0].mxu0
        %v1714 = vpop.f32.mrb[0].mxu0
        %v1715 = vpop.f32.mrb[0].mxu0
        %1716 = vdwg.mxu0
        %1717 = vmatprep.subr.bf16.mxu0 0
        %1718 = vmatpush1.bf16.msra.mxu0 %v499
        %1719 = vmatprep.subr.bf16.mxu0 0
        %1720 = vmatpush1.bf16.msra.mxu0 %v500
        %1721 = vmatprep.subr.bf16.mxu0 0
        %1722 = vmatpush1.bf16.msra.mxu0 %v501
        %1723 = vmatprep.subr.bf16.mxu0 0
        %1724 = vmatpush1.bf16.msra.mxu0 %v502
        %1725 = vmatprep.subr.bf16.mxu0 0
        %1726 = vmatpush1.bf16.msra.mxu0 %v503
        %1727 = vmatprep.subr.bf16.mxu0 0
        %1728 = vmatpush1.bf16.msra.mxu0 %v504
        %1729 = vmatprep.subr.bf16.mxu0 0
        %1730 = vmatpush1.bf16.msra.mxu0 %v505
        %1731 = vmatprep.subr.bf16.mxu0 0
        %1732 = vmatpush1.bf16.msra.mxu0 %v506
        %1733 = vmatprep.subr.bf16.mxu0 0
        %1734 = vmatpush1.bf16.msra.mxu0 0
        %1735 = vmatprep.subr.bf16.mxu0 0
        %1736 = vmatpush1.bf16.msra.mxu0 0
        %1737 = vmatprep.subr.bf16.mxu0 0
        %1738 = vmatpush1.bf16.msra.mxu0 0
        %1739 = vmatprep.subr.bf16.mxu0 0
        %1740 = vmatpush1.bf16.msra.mxu0 0
        %1741 = vmatprep.subr.bf16.mxu0 0
        %1742 = vmatpush1.bf16.msra.mxu0 0
        %1743 = vmatprep.subr.bf16.mxu0 0
        %1744 = vmatpush1.bf16.msra.mxu0 0
        %1745 = vmatprep.subr.bf16.mxu0 0
        %1746 = vmatpush1.bf16.msra.mxu0 0
        %1747 = vmatprep.subr.bf16.mxu0 0
        %1748 = vmatpush1.bf16.msra.mxu0 0
        %1749 = vmatprep.mubr.bf16.mxu0 0
        %1750 = vmatmul.mubr.bf16.gmra.mrb[0].mxu0 %v1665
        %v1751 = vpop.f32.mrb[0].mxu0
        %v1752 = vadd.f32 %v1704, %v1751
        %v1753 = vpop.f32.mrb[0].mxu0
        %v1754 = vpop.f32.mrb[0].mxu0
        %v1755 = vadd.f32 %v1707, %v1754
        %v1756 = vpop.f32.mrb[0].mxu0
        %1757 = vmatprep.mubr.bf16.mxu0 0
        %1758 = vmatmul.mubr.bf16.gmra.mrb[0].mxu0 %v1668
        %v1759 = vpop.f32.mrb[0].mxu0
        %v1760 = vadd.f32 %v1712, %v1759
        %v1761 = vpop.f32.mrb[0].mxu0
        %v1762 = vpop.f32.mrb[0].mxu0
        %v1763 = vpop.f32.mrb[0].mxu0
        %1764 = vdwg.mxu0
        %v1765 = vpack.c.bf16 %v1755, %v1752
        %v1766 = vpack.c.bf16 %v1760, %v1760
        %v1768 = vsel %vm659, %v1765, 0
        %v1771 = vsel %vm659, %v1766, 0
        %1773 = vmatprep.subr.bf16.mxu0 0
        %1774 = vmatpush1.bf16.msra.mxu0 %v651
        %1775 = vmatprep.subr.bf16.mxu0 0
        %1776 = vmatpush1.bf16.msra.mxu0 %v652
        %1777 = vmatprep.subr.bf16.mxu0 0
        %1778 = vmatpush1.bf16.msra.mxu0 %v653
        %1779 = vmatprep.subr.bf16.mxu0 0
        %1780 = vmatpush1.bf16.msra.mxu0 %v654
        %1781 = vmatprep.subr.bf16.mxu0 0
        %1782 = vmatpush1.bf16.msra.mxu0 0
        %1783 = vmatprep.subr.bf16.mxu0 0
        %1784 = vmatpush1.bf16.msra.mxu0 0
        %1785 = vmatprep.subr.bf16.mxu0 0
        %1786 = vmatpush1.bf16.msra.mxu0 0
        %1787 = vmatprep.subr.bf16.mxu0 0
        %1788 = vmatpush1.bf16.msra.mxu0 0
        %1789 = vmatprep.subr.bf16.mxu0 0
        %1790 = vmatpush1.bf16.msra.mxu0 0
        %1791 = vmatprep.subr.bf16.mxu0 0
        %1792 = vmatpush1.bf16.msra.mxu0 0
        %1793 = vmatprep.subr.bf16.mxu0 0
        %1794 = vmatpush1.bf16.msra.mxu0 0
        %1795 = vmatprep.subr.bf16.mxu0 0
        %1796 = vmatpush1.bf16.msra.mxu0 0
        %1797 = vmatprep.subr.bf16.mxu0 0
        %1798 = vmatpush1.bf16.msra.mxu0 0
        %1799 = vmatprep.subr.bf16.mxu0 0
        %1800 = vmatpush1.bf16.msra.mxu0 0
        %1801 = vmatprep.subr.bf16.mxu0 0
        %1802 = vmatpush1.bf16.msra.mxu0 0
        %1803 = vmatprep.subr.bf16.mxu0 0
        %1804 = vmatpush1.bf16.msra.mxu0 0
        %1805 = vmatprep.mubr.bf16.mxu0 0
        %1806 = vmatmul.mubr.bf16.gmra.mrb[0].mxu0 %v1768
        %v1807 = vpop.f32.mrb[0].mxu0
        %v1808 = vadd.f32 %v633, %v1807
        %v1809 = vpop.f32.mrb[0].mxu0
        %v1810 = vpop.f32.mrb[0].mxu0
        %v1811 = vadd.f32 %v633, %v1810
        %v1812 = vpop.f32.mrb[0].mxu0
        %1813 = vmatprep.mubr.bf16.mxu0 0
        %1814 = vmatmul.mubr.bf16.gmra.mrb[0].mxu0 %v1771
        %v1815 = vpop.f32.mrb[0].mxu0
        %v1816 = vadd.f32 %v633, %v1815
        %v1817 = vpop.f32.mrb[0].mxu0
        %v1818 = vpop.f32.mrb[0].mxu0
        %v1819 = vpop.f32.mrb[0].mxu0
        %1820 = vdwg.mxu0
        %v1821 = vmax.f32 %v1808, 0.0
        %v1822 = vmax.f32 %v1811, 0.0
        %v1823 = vmax.f32 %v1816, 0.0
        %v1824 = vpack.c.bf16 %v1822, %v1821
        %v1825 = vpack.c.bf16 %v1823, %v1823
        %v1826 = vld [vmem:[%s4 + $0x60] sm:$0xf]
        %v1827 = vld [vmem:[%s4 + $0x64] sm:$0xf]
        %v1828 = vld [vmem:[%s4 + $0x68] sm:$0xf]
        %v1829 = vld [vmem:[%s4 + $0x6c] sm:$0xf]
        %v1830 = vld [vmem:[%s4 + $0x70] sm:$0xf]
        %v1831 = vld [vmem:[%s4 + $0x74] sm:$0xf]
        %v1832 = vld [vmem:[%s4 + $0x78] sm:$0xf]
        %v1833 = vld [vmem:[%s4 + $0x7c] sm:$0xf]
        %v1842 = vunpack.c.l.b16 %v1826
        %v1843 = vunpack.c.l.b16 %v1827
        %v1844 = vunpack.c.l.b16 %v1828
        %v1845 = vunpack.c.l.b16 %v1829
        %v1846 = vunpack.c.l.b16 %v1830
        %v1847 = vunpack.c.l.b16 %v1831
        %v1848 = vunpack.c.l.b16 %v1832
        %v1849 = vunpack.c.l.b16 %v1833
        %v1850 = vpack.c.b16 %v1843, %v1842
        %v1851 = vpack.c.b16 %v1845, %v1844
        %v1852 = vpack.c.b16 %v1847, %v1846
        %v1853 = vpack.c.b16 %v1849, %v1848
        %v1859 = vsel %vm659, %v1824, 0
        %v1862 = vsel %vm659, %v1825, 0
        %1864 = vmatprep.subr.bf16.mxu0 0
        %1865 = vmatpush1.bf16.msra.mxu0 %v1850
        %1866 = vmatprep.subr.bf16.mxu0 0
        %1867 = vmatpush1.bf16.msra.mxu0 %v1851
        %1868 = vmatprep.subr.bf16.mxu0 0
        %1869 = vmatpush1.bf16.msra.mxu0 %v1852
        %1870 = vmatprep.subr.bf16.mxu0 0
        %1871 = vmatpush1.bf16.msra.mxu0 %v1853
        %1872 = vmatprep.subr.bf16.mxu0 0
        %1873 = vmatpush1.bf16.msra.mxu0 0
        %1874 = vmatprep.subr.bf16.mxu0 0
        %1875 = vmatpush1.bf16.msra.mxu0 0
        %1876 = vmatprep.subr.bf16.mxu0 0
        %1877 = vmatpush1.bf16.msra.mxu0 0
        %1878 = vmatprep.subr.bf16.mxu0 0
        %1879 = vmatpush1.bf16.msra.mxu0 0
        %1880 = vmatprep.subr.bf16.mxu0 0
        %1881 = vmatpush1.bf16.msra.mxu0 0
        %1882 = vmatprep.subr.bf16.mxu0 0
        %1883 = vmatpush1.bf16.msra.mxu0 0
        %1884 = vmatprep.subr.bf16.mxu0 0
        %1885 = vmatpush1.bf16.msra.mxu0 0
        %1886 = vmatprep.subr.bf16.mxu0 0
        %1887 = vmatpush1.bf16.msra.mxu0 0
        %1888 = vmatprep.subr.bf16.mxu0 0
        %1889 = vmatpush1.bf16.msra.mxu0 0
        %1890 = vmatprep.subr.bf16.mxu0 0
        %1891 = vmatpush1.bf16.msra.mxu0 0
        %1892 = vmatprep.subr.bf16.mxu0 0
        %1893 = vmatpush1.bf16.msra.mxu0 0
        %1894 = vmatprep.subr.bf16.mxu0 0
        %1895 = vmatpush1.bf16.msra.mxu0 0
        %1896 = vmatprep.mubr.bf16.mxu0 0
        %1897 = vmatmul.mubr.bf16.gmra.mrb[0].mxu0 %v1859
        %v1898 = vpop.f32.mrb[0].mxu0
        %v1899 = vadd.f32 0.0, %v1898
        %v1900 = vpop.f32.mrb[0].mxu0
        %v1901 = vpop.f32.mrb[0].mxu0
        %v1902 = vadd.f32 0.0, %v1901
        %v1903 = vpop.f32.mrb[0].mxu0
        %1904 = vmatprep.mubr.bf16.mxu0 0
        %1905 = vmatmul.mubr.bf16.gmra.mrb[0].mxu0 %v1862
        %v1906 = vpop.f32.mrb[0].mxu0
        %v1907 = vadd.f32 0.0, %v1906
        %v1908 = vpop.f32.mrb[0].mxu0
        %v1909 = vpop.f32.mrb[0].mxu0
        %v1910 = vpop.f32.mrb[0].mxu0
        %1911 = vdwg.mxu0
        %v1912 = vadd.f32 %v1624, %v1899
        %v1913 = vadd.f32 %v1625, %v1902
        %v1914 = vadd.f32 %v1626, %v1907
        %v1915 = vld [vmem:[%s5 + $0x60] sm:$0xf]
        %v1916 = vld [vmem:[%s5 + $0x64] sm:$0xf]
        %v1917 = vld [vmem:[%s5 + $0x68] sm:$0xf]
        %v1918 = vld [vmem:[%s5 + $0x6c] sm:$0xf]
        %v1919 = vld [vmem:[%s5 + $0x70] sm:$0xf]
        %v1920 = vld [vmem:[%s5 + $0x74] sm:$0xf]
        %v1921 = vld [vmem:[%s5 + $0x78] sm:$0xf]
        %v1922 = vld [vmem:[%s5 + $0x7c] sm:$0xf]
        %v1931 = vunpack.c.l.b16 %v1915
        %v1932 = vunpack.c.l.b16 %v1916
        %v1933 = vunpack.c.l.b16 %v1917
        %v1934 = vunpack.c.l.b16 %v1918
        %v1935 = vunpack.c.l.b16 %v1919
        %v1936 = vunpack.c.l.b16 %v1920
        %v1937 = vunpack.c.l.b16 %v1921
        %v1938 = vunpack.c.l.b16 %v1922
        %v1939 = vpack.c.b16 %v1932, %v1931
        %v1940 = vpack.c.b16 %v1934, %v1933
        %v1941 = vpack.c.b16 %v1936, %v1935
        %v1942 = vpack.c.b16 %v1938, %v1937
        %1947 = vmatprep.subr.bf16.mxu0 0
        %1948 = vmatpush1.bf16.msra.mxu0 %v1939
        %1949 = vmatprep.subr.bf16.mxu0 0
        %1950 = vmatpush1.bf16.msra.mxu0 %v1940
        %1951 = vmatprep.subr.bf16.mxu0 0
        %1952 = vmatpush1.bf16.msra.mxu0 %v1941
        %1953 = vmatprep.subr.bf16.mxu0 0
        %1954 = vmatpush1.bf16.msra.mxu0 %v1942
        %1955 = vmatprep.subr.bf16.mxu0 0
        %1956 = vmatpush1.bf16.msra.mxu0 0
        %1957 = vmatprep.subr.bf16.mxu0 0
        %1958 = vmatpush1.bf16.msra.mxu0 0
        %1959 = vmatprep.subr.bf16.mxu0 0
        %1960 = vmatpush1.bf16.msra.mxu0 0
        %1961 = vmatprep.subr.bf16.mxu0 0
        %1962 = vmatpush1.bf16.msra.mxu0 0
        %1963 = vmatprep.subr.bf16.mxu0 0
        %1964 = vmatpush1.bf16.msra.mxu0 0
        %1965 = vmatprep.subr.bf16.mxu0 0
        %1966 = vmatpush1.bf16.msra.mxu0 0
        %1967 = vmatprep.subr.bf16.mxu0 0
        %1968 = vmatpush1.bf16.msra.mxu0 0
        %1969 = vmatprep.subr.bf16.mxu0 0
        %1970 = vmatpush1.bf16.msra.mxu0 0
        %1971 = vmatprep.subr.bf16.mxu0 0
        %1972 = vmatpush1.bf16.msra.mxu0 0
        %1973 = vmatprep.subr.bf16.mxu0 0
        %1974 = vmatpush1.bf16.msra.mxu0 0
        %1975 = vmatprep.subr.bf16.mxu0 0
        %1976 = vmatpush1.bf16.msra.mxu0 0
        %1977 = vmatprep.subr.bf16.mxu0 0
        %1978 = vmatpush1.bf16.msra.mxu0 0
        %1979 = vmatprep.mubr.bf16.mxu0 0
        %1980 = vmatmul.mubr.bf16.gmra.mrb[0].mxu0 %v1768
        %v1981 = vpop.f32.mrb[0].mxu0
        %v1982 = vadd.f32 0.0, %v1981
        %v1983 = vpop.f32.mrb[0].mxu0
        %v1984 = vpop.f32.mrb[0].mxu0
        %v1985 = vadd.f32 0.0, %v1984
        %v1986 = vpop.f32.mrb[0].mxu0
        %1987 = vmatprep.mubr.bf16.mxu0 0
        %1988 = vmatmul.mubr.bf16.gmra.mrb[0].mxu0 %v1771
        %v1989 = vpop.f32.mrb[0].mxu0
        %v1990 = vadd.f32 0.0, %v1989
        %v1991 = vpop.f32.mrb[0].mxu0
        %v1992 = vpop.f32.mrb[0].mxu0
        %v1993 = vpop.f32.mrb[0].mxu0
        %1994 = vdwg.mxu0
        %v1995 = vadd.f32 %v1912, %v1982
        %v1996 = vadd.f32 %v1913, %v1985
        %v1997 = vadd.f32 %v1914, %v1990
        %v1998 = vld [vmem:[%s6] sm:$0x1]
        %v2000 = vlaneseq
        %v2001 = vshrl.u32 %v2000, 7
        %v2002 = vsub.s32 0, %v2001
        %v2003 = vrot.slane %v1998, %v2002
        %v2005 = vadd.f32 %v1995, %v2003
        %v2006 = vadd.f32 %v1996, %v2003
        %v2007 = vadd.f32 %v1997, %v2003
        %2008 = vst [vmem:[%s272] sm:$0xff] %v2005
        %2009 = vst [vmem:[%s272 + $0x8] sm:$0xff] %v2006
        %2010 = vst [vmem:[%s272 + $0x10] sm:$0xff] %v2007
        %s2011 = sand.u32 %s181, 1
        %s2012 = scalar_lea.sflag [#allocation3], %s2011
        %s2013 = sand.u32 %s181, 1
        %s2014 = smul.addr %s2013, 24
        %s2015 = scalar_lea.vmem [#allocation2], %s2014
        // Predicated region
        $region49: #{tpu_custom_call.1} parent=47 // pred_check
          %p2016 = pneg %p191
        $region50: #{tpu_custom_call.1} parent=47 // pred_check_branch
          %2018 = sbr.rel (%p2016) target = $region52
        $region51: #{tpu_custom_call.1} parent=47 // pred_region
          %s2019 = smul.u32 3, %s21
          %s2021 = ssub.s32 384, 384
          %2022 = vsyncadd %s2012, %s2021
          %s2023 = smul.addr %s2019, 128
          %s2024 = scalar_lea.hbm %s7, %s2023
          %s2025 = sshll.u32 %s2015, 4
          %s2026 = int_to_ptr.vmem [resolvable:$true] %s2025
          %2031 = dma.vmem_to_hbm [thread:$0]  %s2026, 384, %s2024, %s2012, 128, 128, 8
        $region52: #{tpu_custom_call.1} parent=47 // pred_fallthru
          _
      $region48: #{tpu_custom_call.1} parent=5 // pred_fallthru
        _
      %p2032 = scmp.le.s32.totalorder 2, %s16
      // Predicated region
      $region53: #{tpu_custom_call.1} parent=5 // pred_check
        %p2033 = pneg %p2032
      $region54: #{tpu_custom_call.1} parent=5 // pred_check_branch
        %2035 = sbr.rel (%p2033) target = $region56
      $region55: #{tpu_custom_call.1} parent=5 // pred_region
        %s2036 = ssub.s32 %s16, 2
        // Predicated region
        $region57: #{tpu_custom_call.1} parent=55 // pred_check
          %p2037 = pneg %p197
        $region58: #{tpu_custom_call.1} parent=55 // pred_check_branch
          %2039 = sbr.rel (%p2037) target = $region60
        $region59: #{tpu_custom_call.1} parent=55 // pred_region
          %s2040 = sand.u32 %s182, 1
          %s2041 = scalar_lea.sflag [#allocation3], %s2040
          %s2042 = sand.u32 %s182, 1
          %s2043 = smul.addr %s2042, 24
          %s2044 = scalar_lea.vmem [#allocation2], %s2043
          %2045 = dma.done %s2041, 384
        $region60: #{tpu_custom_call.1} parent=55 // pred_fallthru
          _
      $region56: #{tpu_custom_call.1} parent=5 // pred_fallthru
        _
    $region6: #{tpu_custom_call.1} parent=1 // loop_footer
      %s20 = sadd.s32 1, %s16
    $region7: #{tpu_custom_call.1} parent=1 // loop_footer_branch
      %15 = sbr.rel target = $region3
    $region8: #{tpu_custom_call.1} parent=1 // loop_exit
      _
    %2046 = vsyncpa [#allocation3], 1
    %s2047 = scalar_lea.sflag [#allocation3], 1
    %2048 = vsyncpa %s2047, 1

</llo_original>
